<compile_context>
chip_gen: v7x
topology: tpu7x:2x2x1
jax: 0.10.0
libtpu: 0.0.40
codegen_flags: <defaults>
</compile_context>

<pallas_src>
import functools

import numpy as np
import jax
import jax.numpy as jnp
from jax import lax
from jax.experimental import pallas as pl
from jax.experimental.pallas import tpu as pltpu

EPS = 1e-5
LANES = 128


def _round_up(x, m):
    return (x + m - 1) // m * m


def _largest_divisor_leq(n, cap):
    for d in range(min(n, cap), 0, -1):
        if n % d == 0:
            return d
    return 1


def _make_conv_stats_kernel(th, ow, kh, kw):
    """Pass 1: conv on a halo'd NHWC row tile via kh*kw shifted matmuls
    (f32 accumulation) + per-tile per-channel sum / sum-of-squares partials."""

    def kernel(*refs):
        x_ref = refs[0]                  # (1, TH, WP, C)
        halo_refs = refs[1:kh]           # kh-1 x (1, 1, WP, C)
        w_ref = refs[kh]                 # (KH, KW, C, OCP)
        y_ref = refs[kh + 1]             # (TH*OW, OCP) f32
        stats_ref = refs[kh + 2]         # (1, 8, OCP) f32: row0=sum, row1=sumsq

        x = x_ref[0]                     # (TH, WP, C)
        if kh > 1:
            x = jnp.concatenate([x] + [h[0] for h in halo_refs], axis=0)

        ocp = w_ref.shape[-1]
        acc = jnp.zeros((th * ow, ocp), jnp.float32)
        for i in range(kh):
            for j in range(kw):
                patch = x[i:i + th, j:j + ow, :].reshape(th * ow, -1)
                acc = acc + jnp.dot(patch, w_ref[i, j],
                                    preferred_element_type=jnp.float32)

        y_ref[...] = acc
        s = jnp.sum(acc, axis=0, keepdims=True)           # (1, OCP)
        ss = jnp.sum(acc * acc, axis=0, keepdims=True)    # (1, OCP)
        stats_ref[0] = jnp.concatenate(
            [s, ss, jnp.zeros((6, ocp), jnp.float32)], axis=0)

    return kernel


def _bn_apply_kernel(y_ref, scale_ref, bias_ref, o_ref):
    # Pass 2: lane-dense (TM, OCP) tile; scale/bias pre-folded -> one FMA/elem.
    o_ref[...] = y_ref[...] * scale_ref[...] + bias_ref[...]


@functools.partial(jax.jit, static_argnames=("stride", "padding", "eps",
                                             "compute_dtype", "block_h"))
def conv_bn2d(x_nchw, weight_oihw, gamma, beta, stride=(1, 1), padding=(1, 1),
              eps=EPS, compute_dtype=jnp.float32, block_h=None):
    """Forward pass of ConvBn2d. Input/output are NCHW float32."""
    n, c, h, w = x_nchw.shape
    oc, ci, kh, kw = weight_oihw.shape
    assert ci == c
    ph, pw = padding
    assert tuple(stride) == (1, 1), "implemented for stride=(1,1) (module default)"
    # TODO(synk): strided conv and the BatchNorm running_mean/running_var EMA
    # buffer updates (training-mode side effect) are not implemented here.

    oh = h + 2 * ph - kh + 1
    ow = w + 2 * pw - kw + 1
    wp = w + 2 * pw
    ocp = _round_up(oc, LANES)           # lane-dense output channels

    # NHWC + spatial zero-pad once; kernel consumes raw NHWC tiles (no im2col).
    x_nhwc = jnp.transpose(x_nchw, (0, 2, 3, 1)).astype(compute_dtype)
    x_pad = jnp.pad(x_nhwc, ((0, 0), (ph, ph), (pw, pw), (0, 0)))

    # (OC, C, KH, KW) -> (KH, KW, C, OCP), zero-padded along OC.
    w_k = jnp.transpose(weight_oihw, (2, 3, 1, 0)).astype(compute_dtype)
    w_k = jnp.pad(w_k, ((0, 0), (0, 0), (0, 0), (0, ocp - oc)))

    # Row-tile size: (TH*OW, OCP) f32 tiles stay well inside the default scoped
    # VMEM (16/32/32 MiB on v5e/v6e/v7x) even double-buffered.
    if block_h is None:
        block_h = _largest_divisor_leq(oh, max(1, 512 // max(ow, 1)))
    th = int(block_h)
    assert oh % th == 0, "block_h must divide the output height"
    nrt = oh // th                       # row tiles per image
    nt = n * nrt                         # total tiles
    m = n * oh * ow                      # flattened output rows

    kernel = _make_conv_stats_kernel(th, ow, kh, kw)

    x_specs = [pl.BlockSpec((1, th, wp, c), lambda b, r: (b, r, 0, 0))]
    for t in range(kh - 1):              # halo rows: first rows of next tile
        x_specs.append(pl.BlockSpec(
            (1, 1, wp, c), lambda b, r, t=t: (b, r * th + th + t, 0, 0)))
    w_spec = pl.BlockSpec((kh, kw, c, ocp), lambda b, r: (0, 0, 0, 0))

    y_flat, stats = pl.pallas_call(
        kernel,
        grid=(n, nrt),
        in_specs=x_specs + [w_spec],
        out_specs=(
            pl.BlockSpec((th * ow, ocp), lambda b, r: (b * nrt + r, 0)),
            pl.BlockSpec((1, 8, ocp), lambda b, r: (b * nrt + r, 0, 0)),
        ),
        out_shape=(
            jax.ShapeDtypeStruct((m, ocp), jnp.float32),
            jax.ShapeDtypeStruct((nt, 8, ocp), jnp.float32),
        ),
        compiler_params=pltpu.CompilerParams(
            dimension_semantics=("parallel", "parallel")),
    )(x_pad, *([x_pad] * (kh - 1)), w_k)

    # Tiny cross-tile BN reduction, then fold gamma/beta into scale/bias.
    # NOTE: E[y^2]-mean^2 is slightly less stable than two-pass centered
    # variance; accumulation stays f32 and var is clamped at 0.
    s_sum = jnp.sum(stats[:, 0, :], axis=0)
    s_sq = jnp.sum(stats[:, 1, :], axis=0)
    mean = s_sum / m
    var = jnp.maximum(s_sq / m - mean * mean, 0.0)   # biased var (BN training)
    gamma_p = jnp.pad(gamma.astype(jnp.float32), (0, ocp - oc))
    beta_p = jnp.pad(beta.astype(jnp.float32), (0, ocp - oc))
    scale_v = gamma_p * lax.rsqrt(var + eps)
    bias_v = beta_p - mean * scale_v
    scale2d = scale_v.reshape(1, ocp)
    bias2d = bias_v.reshape(1, ocp)

    # Pass 2: normalize with lane-dense tiles; grow row tile while it divides M.
    tile_rows = th * ow
    while m % (tile_rows * 2) == 0 and tile_rows * 2 <= 2048:
        tile_rows *= 2

    out_flat = pl.pallas_call(
        _bn_apply_kernel,
        grid=(m // tile_rows,),
        in_specs=[pl.BlockSpec((tile_rows, ocp), lambda i: (i, 0)),
                  pl.BlockSpec((1, ocp), lambda i: (0, 0)),
                  pl.BlockSpec((1, ocp), lambda i: (0, 0))],
        out_specs=pl.BlockSpec((tile_rows, ocp), lambda i: (i, 0)),
        out_shape=jax.ShapeDtypeStruct((m, ocp), jnp.float32),
        compiler_params=pltpu.CompilerParams(
            dimension_semantics=("parallel",)),
    )(y_flat, scale2d, bias2d)

    out_nhwc = out_flat[:, :oc].reshape(n, oh, ow, oc)
    return jnp.transpose(out_nhwc, (0, 3, 1, 2))     # back to NCHW


def _reference(x_nchw, weight_oihw, gamma, beta, stride=(1, 1), padding=(1, 1)):
    y = lax.conv_general_dilated(
        x_nchw, weight_oihw, window_strides=stride,
        padding=((padding[0], padding[0]), (padding[1], padding[1])),
        dimension_numbers=("NCHW", "OIHW", "NCHW"))
    mean = y.mean(axis=(0, 2, 3), keepdims=True)
    var = y.var(axis=(0, 2, 3), keepdims=True)   # biased, like BN training
    return (y - mean) / jnp.sqrt(var + EPS) * gamma.reshape(1, -1, 1, 1) \
        + beta.reshape(1, -1, 1, 1)


if __name__ == "__main__":
    key = jax.random.PRNGKey(0)
    k_x, k_w, k_g, k_b = jax.random.split(key, 4)

    N, C, H, W = 2, 4, 16, 16
    OC, KH, KW = 8, 3, 3

    x = jax.random.normal(k_x, (N, C, H, W), dtype=jnp.float32)
    weight = jax.random.normal(k_w, (OC, C, KH, KW), dtype=jnp.float32) * 0.1
    gamma = 1.0 + 0.1 * jax.random.normal(k_g, (OC,), dtype=jnp.float32)
    beta = 0.1 * jax.random.normal(k_b, (OC,), dtype=jnp.float32)

    ref = jax.block_until_ready(_reference(x, weight, gamma, beta))

    # f32 MXU-input path with a small row tile (exercises the multi-tile grid
    # and the halo rows across tile boundaries); strict tolerance.
    out_f32 = jax.block_until_ready(
        conv_bn2d(x, weight, gamma, beta, compute_dtype=jnp.float32, block_h=4))
    np.testing.assert_allclose(np.asarray(out_f32), np.asarray(ref),
                               atol=1e-3, rtol=1e-3)

    # bf16 MXU-input path (native on v5e/v6e MXU), f32 accumulation + f32 BN
    # statistics; looser tolerance for the bf16 input rounding.
    out_bf16 = jax.block_until_ready(
        conv_bn2d(x, weight, gamma, beta, compute_dtype=jnp.bfloat16))
    np.testing.assert_allclose(np.asarray(out_bf16), np.asarray(ref),
                               atol=5e-2, rtol=5e-2)

    print("KERNEL_OK")
</pallas_src>

<mosaic_0001>
module attributes {stable_mosaic.version = 11 : i64} {
  func.func @kernel(%arg0: i32, %arg1: i32, %arg2: memref<1x4x18x4xf32, #tpu.memory_space<vmem>>, %arg3: memref<1x1x18x4xf32, #tpu.memory_space<vmem>>, %arg4: memref<1x1x18x4xf32, #tpu.memory_space<vmem>>, %arg5: memref<3x3x4x128xf32, #tpu.memory_space<vmem>>, %arg6: memref<64x128xf32, #tpu.memory_space<vmem>>, %arg7: memref<1x8x128xf32, #tpu.memory_space<vmem>>) attributes {dimension_semantics = [#tpu.dimension_semantics<parallel>, #tpu.dimension_semantics<parallel>], iteration_bounds = array<i64: 2, 4>, scalar_prefetch = 0 : i64, scratch_operands = 0 : i64, tpu.core_type = #tpu.core_type<tc>, window_params = [{transform_indices = @transform_0, window_bounds = array<i64: 1, 4, 18, 4>}, {transform_indices = @transform_1, window_bounds = array<i64: 1, 1, 18, 4>}, {transform_indices = @transform_2, window_bounds = array<i64: 1, 1, 18, 4>}, {pipeline_mode = #tpu.pipeline_mode<synchronous>, transform_indices = @transform_3, window_bounds = array<i64: 3, 3, 4, 128>}, {transform_indices = @transform_4, window_bounds = array<i64: 64, 128>}, {transform_indices = @transform_5, window_bounds = array<i64: 1, 8, 128>}]} {
    %c0 = arith.constant 0 : index
    %c0_0 = arith.constant 0 : index
    %c0_1 = arith.constant 0 : index
    %c0_2 = arith.constant 0 : index
    %0 = vector.load %arg2[%c0, %c0_0, %c0_1, %c0_2] : memref<1x4x18x4xf32, #tpu.memory_space<vmem>>, vector<1x4x18x4xf32>
    %1 = vector.shape_cast %0 : vector<1x4x18x4xf32> to vector<4x18x4xf32>
    %c0_3 = arith.constant 0 : index
    %c0_4 = arith.constant 0 : index
    %c0_5 = arith.constant 0 : index
    %c0_6 = arith.constant 0 : index
    %2 = vector.load %arg3[%c0_3, %c0_4, %c0_5, %c0_6] : memref<1x1x18x4xf32, #tpu.memory_space<vmem>>, vector<1x1x18x4xf32>
    %3 = vector.shape_cast %2 : vector<1x1x18x4xf32> to vector<1x18x4xf32>
    %c0_7 = arith.constant 0 : index
    %c0_8 = arith.constant 0 : index
    %c0_9 = arith.constant 0 : index
    %c0_10 = arith.constant 0 : index
    %4 = vector.load %arg4[%c0_7, %c0_8, %c0_9, %c0_10] : memref<1x1x18x4xf32, #tpu.memory_space<vmem>>, vector<1x1x18x4xf32>
    %5 = vector.shape_cast %4 : vector<1x1x18x4xf32> to vector<1x18x4xf32>
    %6 = tpu.concatenate %1, %3, %5 in 0 : vector<4x18x4xf32>, vector<1x18x4xf32>, vector<1x18x4xf32> -> vector<6x18x4xf32>
    %cst = arith.constant 0.000000e+00 : f32
    %7 = vector.broadcast %cst : f32 to vector<64x128xf32>
    %8 = vector.extract_strided_slice %6 {offsets = [0, 0, 0], sizes = [4, 16, 4], strides = [1, 1, 1]} : vector<6x18x4xf32> to vector<4x16x4xf32>
    %9 = vector.shape_cast %8 : vector<4x16x4xf32> to vector<64x4xf32>
    %c0_11 = arith.constant 0 : index
    %c0_12 = arith.constant 0 : index
    %c0_13 = arith.constant 0 : index
    %c0_14 = arith.constant 0 : index
    %10 = vector.load %arg5[%c0_11, %c0_12, %c0_13, %c0_14] : memref<3x3x4x128xf32, #tpu.memory_space<vmem>>, vector<1x1x4x128xf32>
    %11 = vector.shape_cast %10 : vector<1x1x4x128xf32> to vector<4x128xf32>
    %cst_15 = arith.constant dense<0.000000e+00> : vector<64x128xf32>
    %12 = tpu.matmul %9, %11, %cst_15 {dimension_numbers = #tpu.dot_dimension_numbers<[1], [0], [0], [1], [0, 0, 1, 1], [], []>} : vector<64x4xf32>, vector<4x128xf32>, vector<64x128xf32> -> vector<64x128xf32>
    %13 = arith.addf %7, %12 : vector<64x128xf32>
    %14 = vector.extract_strided_slice %6 {offsets = [0, 1, 0], sizes = [4, 16, 4], strides = [1, 1, 1]} : vector<6x18x4xf32> to vector<4x16x4xf32>
    %15 = vector.shape_cast %14 : vector<4x16x4xf32> to vector<64x4xf32>
    %c0_16 = arith.constant 0 : index
    %c1 = arith.constant 1 : index
    %c0_17 = arith.constant 0 : index
    %c0_18 = arith.constant 0 : index
    %16 = vector.load %arg5[%c0_16, %c1, %c0_17, %c0_18] : memref<3x3x4x128xf32, #tpu.memory_space<vmem>>, vector<1x1x4x128xf32>
    %17 = vector.shape_cast %16 : vector<1x1x4x128xf32> to vector<4x128xf32>
    %cst_19 = arith.constant dense<0.000000e+00> : vector<64x128xf32>
    %18 = tpu.matmul %15, %17, %cst_19 {dimension_numbers = #tpu.dot_dimension_numbers<[1], [0], [0], [1], [0, 0, 1, 1], [], []>} : vector<64x4xf32>, vector<4x128xf32>, vector<64x128xf32> -> vector<64x128xf32>
    %19 = arith.addf %13, %18 : vector<64x128xf32>
    %20 = vector.extract_strided_slice %6 {offsets = [0, 2, 0], sizes = [4, 16, 4], strides = [1, 1, 1]} : vector<6x18x4xf32> to vector<4x16x4xf32>
    %21 = vector.shape_cast %20 : vector<4x16x4xf32> to vector<64x4xf32>
    %c0_20 = arith.constant 0 : index
    %c2 = arith.constant 2 : index
    %c0_21 = arith.constant 0 : index
    %c0_22 = arith.constant 0 : index
    %22 = vector.load %arg5[%c0_20, %c2, %c0_21, %c0_22] : memref<3x3x4x128xf32, #tpu.memory_space<vmem>>, vector<1x1x4x128xf32>
    %23 = vector.shape_cast %22 : vector<1x1x4x128xf32> to vector<4x128xf32>
    %cst_23 = arith.constant dense<0.000000e+00> : vector<64x128xf32>
    %24 = tpu.matmul %21, %23, %cst_23 {dimension_numbers = #tpu.dot_dimension_numbers<[1], [0], [0], [1], [0, 0, 1, 1], [], []>} : vector<64x4xf32>, vector<4x128xf32>, vector<64x128xf32> -> vector<64x128xf32>
    %25 = arith.addf %19, %24 : vector<64x128xf32>
    %26 = vector.extract_strided_slice %6 {offsets = [1, 0, 0], sizes = [4, 16, 4], strides = [1, 1, 1]} : vector<6x18x4xf32> to vector<4x16x4xf32>
    %27 = vector.shape_cast %26 : vector<4x16x4xf32> to vector<64x4xf32>
    %c1_24 = arith.constant 1 : index
    %c0_25 = arith.constant 0 : index
    %c0_26 = arith.constant 0 : index
    %c0_27 = arith.constant 0 : index
    %28 = vector.load %arg5[%c1_24, %c0_25, %c0_26, %c0_27] : memref<3x3x4x128xf32, #tpu.memory_space<vmem>>, vector<1x1x4x128xf32>
    %29 = vector.shape_cast %28 : vector<1x1x4x128xf32> to vector<4x128xf32>
    %cst_28 = arith.constant dense<0.000000e+00> : vector<64x128xf32>
    %30 = tpu.matmul %27, %29, %cst_28 {dimension_numbers = #tpu.dot_dimension_numbers<[1], [0], [0], [1], [0, 0, 1, 1], [], []>} : vector<64x4xf32>, vector<4x128xf32>, vector<64x128xf32> -> vector<64x128xf32>
    %31 = arith.addf %25, %30 : vector<64x128xf32>
    %32 = vector.extract_strided_slice %6 {offsets = [1, 1, 0], sizes = [4, 16, 4], strides = [1, 1, 1]} : vector<6x18x4xf32> to vector<4x16x4xf32>
    %33 = vector.shape_cast %32 : vector<4x16x4xf32> to vector<64x4xf32>
    %c1_29 = arith.constant 1 : index
    %c1_30 = arith.constant 1 : index
    %c0_31 = arith.constant 0 : index
    %c0_32 = arith.constant 0 : index
    %34 = vector.load %arg5[%c1_29, %c1_30, %c0_31, %c0_32] : memref<3x3x4x128xf32, #tpu.memory_space<vmem>>, vector<1x1x4x128xf32>
    %35 = vector.shape_cast %34 : vector<1x1x4x128xf32> to vector<4x128xf32>
    %cst_33 = arith.constant dense<0.000000e+00> : vector<64x128xf32>
    %36 = tpu.matmul %33, %35, %cst_33 {dimension_numbers = #tpu.dot_dimension_numbers<[1], [0], [0], [1], [0, 0, 1, 1], [], []>} : vector<64x4xf32>, vector<4x128xf32>, vector<64x128xf32> -> vector<64x128xf32>
    %37 = arith.addf %31, %36 : vector<64x128xf32>
    %38 = vector.extract_strided_slice %6 {offsets = [1, 2, 0], sizes = [4, 16, 4], strides = [1, 1, 1]} : vector<6x18x4xf32> to vector<4x16x4xf32>
    %39 = vector.shape_cast %38 : vector<4x16x4xf32> to vector<64x4xf32>
    %c1_34 = arith.constant 1 : index
    %c2_35 = arith.constant 2 : index
    %c0_36 = arith.constant 0 : index
    %c0_37 = arith.constant 0 : index
    %40 = vector.load %arg5[%c1_34, %c2_35, %c0_36, %c0_37] : memref<3x3x4x128xf32, #tpu.memory_space<vmem>>, vector<1x1x4x128xf32>
    %41 = vector.shape_cast %40 : vector<1x1x4x128xf32> to vector<4x128xf32>
    %cst_38 = arith.constant dense<0.000000e+00> : vector<64x128xf32>
    %42 = tpu.matmul %39, %41, %cst_38 {dimension_numbers = #tpu.dot_dimension_numbers<[1], [0], [0], [1], [0, 0, 1, 1], [], []>} : vector<64x4xf32>, vector<4x128xf32>, vector<64x128xf32> -> vector<64x128xf32>
    %43 = arith.addf %37, %42 : vector<64x128xf32>
    %44 = vector.extract_strided_slice %6 {offsets = [2, 0, 0], sizes = [4, 16, 4], strides = [1, 1, 1]} : vector<6x18x4xf32> to vector<4x16x4xf32>
    %45 = vector.shape_cast %44 : vector<4x16x4xf32> to vector<64x4xf32>
    %c2_39 = arith.constant 2 : index
    %c0_40 = arith.constant 0 : index
    %c0_41 = arith.constant 0 : index
    %c0_42 = arith.constant 0 : index
    %46 = vector.load %arg5[%c2_39, %c0_40, %c0_41, %c0_42] : memref<3x3x4x128xf32, #tpu.memory_space<vmem>>, vector<1x1x4x128xf32>
    %47 = vector.shape_cast %46 : vector<1x1x4x128xf32> to vector<4x128xf32>
    %cst_43 = arith.constant dense<0.000000e+00> : vector<64x128xf32>
    %48 = tpu.matmul %45, %47, %cst_43 {dimension_numbers = #tpu.dot_dimension_numbers<[1], [0], [0], [1], [0, 0, 1, 1], [], []>} : vector<64x4xf32>, vector<4x128xf32>, vector<64x128xf32> -> vector<64x128xf32>
    %49 = arith.addf %43, %48 : vector<64x128xf32>
    %50 = vector.extract_strided_slice %6 {offsets = [2, 1, 0], sizes = [4, 16, 4], strides = [1, 1, 1]} : vector<6x18x4xf32> to vector<4x16x4xf32>
    %51 = vector.shape_cast %50 : vector<4x16x4xf32> to vector<64x4xf32>
    %c2_44 = arith.constant 2 : index
    %c1_45 = arith.constant 1 : index
    %c0_46 = arith.constant 0 : index
    %c0_47 = arith.constant 0 : index
    %52 = vector.load %arg5[%c2_44, %c1_45, %c0_46, %c0_47] : memref<3x3x4x128xf32, #tpu.memory_space<vmem>>, vector<1x1x4x128xf32>
    %53 = vector.shape_cast %52 : vector<1x1x4x128xf32> to vector<4x128xf32>
    %cst_48 = arith.constant dense<0.000000e+00> : vector<64x128xf32>
    %54 = tpu.matmul %51, %53, %cst_48 {dimension_numbers = #tpu.dot_dimension_numbers<[1], [0], [0], [1], [0, 0, 1, 1], [], []>} : vector<64x4xf32>, vector<4x128xf32>, vector<64x128xf32> -> vector<64x128xf32>
    %55 = arith.addf %49, %54 : vector<64x128xf32>
    %56 = vector.extract_strided_slice %6 {offsets = [2, 2, 0], sizes = [4, 16, 4], strides = [1, 1, 1]} : vector<6x18x4xf32> to vector<4x16x4xf32>
    %57 = vector.shape_cast %56 : vector<4x16x4xf32> to vector<64x4xf32>
    %c2_49 = arith.constant 2 : index
    %c2_50 = arith.constant 2 : index
    %c0_51 = arith.constant 0 : index
    %c0_52 = arith.constant 0 : index
    %58 = vector.load %arg5[%c2_49, %c2_50, %c0_51, %c0_52] : memref<3x3x4x128xf32, #tpu.memory_space<vmem>>, vector<1x1x4x128xf32>
    %59 = vector.shape_cast %58 : vector<1x1x4x128xf32> to vector<4x128xf32>
    %cst_53 = arith.constant dense<0.000000e+00> : vector<64x128xf32>
    %60 = tpu.matmul %57, %59, %cst_53 {dimension_numbers = #tpu.dot_dimension_numbers<[1], [0], [0], [1], [0, 0, 1, 1], [], []>} : vector<64x4xf32>, vector<4x128xf32>, vector<64x128xf32> -> vector<64x128xf32>
    %61 = arith.addf %55, %60 : vector<64x128xf32>
    %c0_54 = arith.constant 0 : index
    %c0_55 = arith.constant 0 : index
    %62 = vector.load %arg6[%c0_54, %c0_55] : memref<64x128xf32, #tpu.memory_space<vmem>>, vector<64x128xf32>
    tpu.vector_store %arg6[%c0_54, %c0_55], %61 {strides = array<i32>} : memref<64x128xf32, #tpu.memory_space<vmem>>, vector<64x128xf32>,
    %cst_56 = arith.constant dense<0.000000e+00> : vector<128xf32>
    %63 = vector.multi_reduction <add>, %61, %cst_56 [0] : vector<64x128xf32> to vector<128xf32>
    %64 = vector.shape_cast %63 : vector<128xf32> to vector<1x128xf32>
    %65 = arith.mulf %61, %61 : vector<64x128xf32>
    %cst_57 = arith.constant dense<0.000000e+00> : vector<128xf32>
    %66 = vector.multi_reduction <add>, %65, %cst_57 [0] : vector<64x128xf32> to vector<128xf32>
    %67 = vector.shape_cast %66 : vector<128xf32> to vector<1x128xf32>
    %cst_58 = arith.constant 0.000000e+00 : f32
    %68 = vector.broadcast %cst_58 : f32 to vector<6x128xf32>
    %69 = tpu.concatenate %64, %67, %68 in 0 : vector<1x128xf32>, vector<1x128xf32>, vector<6x128xf32> -> vector<8x128xf32>
    %c0_59 = arith.constant 0 : index
    %c0_60 = arith.constant 0 : index
    %c0_61 = arith.constant 0 : index
    %70 = vector.load %arg7[%c0_59, %c0_60, %c0_61] : memref<1x8x128xf32, #tpu.memory_space<vmem>>, vector<1x8x128xf32>
    %71 = vector.shape_cast %70 : vector<1x8x128xf32> to vector<8x128xf32>
    %72 = vector.shape_cast %69 : vector<8x128xf32> to vector<1x8x128xf32>
    tpu.vector_store %arg7[%c0_59, %c0_60, %c0_61], %72 {strides = array<i32>} : memref<1x8x128xf32, #tpu.memory_space<vmem>>, vector<1x8x128xf32>,
    return
  }
  func.func @transform_0(%arg0: i32, %arg1: i32) -> (i32, i32, i32, i32) {
    %c0_i32 = arith.constant 0 : i32
    %c0_i32_0 = arith.constant 0 : i32
    %c0_i32_1 = arith.constant 0 : i32
    return %arg0, %arg1, %c0_i32, %c0_i32_0 : i32, i32, i32, i32
  }
  func.func @transform_1(%arg0: i32, %arg1: i32) -> (i32, i32, i32, i32) {
    %c4_i32 = arith.constant 4 : i32
    %0 = arith.muli %arg1, %c4_i32 : i32
    %c4_i32_0 = arith.constant 4 : i32
    %1 = arith.addi %0, %c4_i32_0 : i32
    %c0_i32 = arith.constant 0 : i32
    %2 = arith.addi %1, %c0_i32 : i32
    %c0_i32_1 = arith.constant 0 : i32
    %c0_i32_2 = arith.constant 0 : i32
    %c0_i32_3 = arith.constant 0 : i32
    return %arg0, %2, %c0_i32_1, %c0_i32_2 : i32, i32, i32, i32
  }
  func.func @transform_2(%arg0: i32, %arg1: i32) -> (i32, i32, i32, i32) {
    %c4_i32 = arith.constant 4 : i32
    %0 = arith.muli %arg1, %c4_i32 : i32
    %c4_i32_0 = arith.constant 4 : i32
    %1 = arith.addi %0, %c4_i32_0 : i32
    %c1_i32 = arith.constant 1 : i32
    %2 = arith.addi %1, %c1_i32 : i32
    %c0_i32 = arith.constant 0 : i32
    %c0_i32_1 = arith.constant 0 : i32
    %c0_i32_2 = arith.constant 0 : i32
    return %arg0, %2, %c0_i32, %c0_i32_1 : i32, i32, i32, i32
  }
  func.func @transform_3(%arg0: i32, %arg1: i32) -> (i32, i32, i32, i32) {
    %c0_i32 = arith.constant 0 : i32
    %c0_i32_0 = arith.constant 0 : i32
    %c0_i32_1 = arith.constant 0 : i32
    %c0_i32_2 = arith.constant 0 : i32
    %c0_i32_3 = arith.constant 0 : i32
    return %c0_i32, %c0_i32_0, %c0_i32_1, %c0_i32_2 : i32, i32, i32, i32
  }
  func.func @transform_4(%arg0: i32, %arg1: i32) -> (i32, i32) {
    %c4_i32 = arith.constant 4 : i32
    %0 = arith.muli %arg0, %c4_i32 : i32
    %1 = arith.addi %0, %arg1 : i32
    %c0_i32 = arith.constant 0 : i32
    %c0_i32_0 = arith.constant 0 : i32
    return %1, %c0_i32 : i32, i32
  }
  func.func @transform_5(%arg0: i32, %arg1: i32) -> (i32, i32, i32) {
    %c4_i32 = arith.constant 4 : i32
    %0 = arith.muli %arg0, %c4_i32 : i32
    %1 = arith.addi %0, %arg1 : i32
    %c0_i32 = arith.constant 0 : i32
    %c0_i32_0 = arith.constant 0 : i32
    %c0_i32_1 = arith.constant 0 : i32
    return %1, %c0_i32, %c0_i32_0 : i32, i32, i32
  }
}

module attributes {stable_mosaic.version = 11 : i64} {
  func.func @_bn_apply_kernel(%arg0: i32, %arg1: memref<512x128xf32, #tpu.memory_space<vmem>>, %arg2: memref<1x128xf32, #tpu.memory_space<vmem>>, %arg3: memref<1x128xf32, #tpu.memory_space<vmem>>, %arg4: memref<512x128xf32, #tpu.memory_space<vmem>>) attributes {dimension_semantics = [#tpu.dimension_semantics<parallel>], iteration_bounds = array<i64: 1>, scalar_prefetch = 0 : i64, scratch_operands = 0 : i64, tpu.core_type = #tpu.core_type<tc>, window_params = [{transform_indices = @transform_0, window_bounds = array<i64: 512, 128>}, {pipeline_mode = #tpu.pipeline_mode<synchronous>, transform_indices = @transform_1, window_bounds = array<i64: 1, 128>}, {pipeline_mode = #tpu.pipeline_mode<synchronous>, transform_indices = @transform_2, window_bounds = array<i64: 1, 128>}, {transform_indices = @transform_3, window_bounds = array<i64: 512, 128>}]} {
    %c0 = arith.constant 0 : index
    %c0_0 = arith.constant 0 : index
    %0 = vector.load %arg1[%c0, %c0_0] : memref<512x128xf32, #tpu.memory_space<vmem>>, vector<512x128xf32>
    %c0_1 = arith.constant 0 : index
    %c0_2 = arith.constant 0 : index
    %1 = vector.load %arg2[%c0_1, %c0_2] : memref<1x128xf32, #tpu.memory_space<vmem>>, vector<1x128xf32>
    %2 = vector.broadcast %1 : vector<1x128xf32> to vector<512x128xf32>
    %3 = arith.mulf %0, %2 : vector<512x128xf32>
    %c0_3 = arith.constant 0 : index
    %c0_4 = arith.constant 0 : index
    %4 = vector.load %arg3[%c0_3, %c0_4] : memref<1x128xf32, #tpu.memory_space<vmem>>, vector<1x128xf32>
    %5 = vector.broadcast %4 : vector<1x128xf32> to vector<512x128xf32>
    %6 = arith.addf %3, %5 : vector<512x128xf32>
    %c0_5 = arith.constant 0 : index
    %c0_6 = arith.constant 0 : index
    %7 = vector.load %arg4[%c0_5, %c0_6] : memref<512x128xf32, #tpu.memory_space<vmem>>, vector<512x128xf32>
    tpu.vector_store %arg4[%c0_5, %c0_6], %6 {strides = array<i32>} : memref<512x128xf32, #tpu.memory_space<vmem>>, vector<512x128xf32>,
    return
  }
  func.func @transform_0(%arg0: i32) -> (i32, i32) {
    %c0_i32 = arith.constant 0 : i32
    %c0_i32_0 = arith.constant 0 : i32
    return %arg0, %c0_i32 : i32, i32
  }
  func.func @transform_1(%arg0: i32) -> (i32, i32) {
    %c0_i32 = arith.constant 0 : i32
    %c0_i32_0 = arith.constant 0 : i32
    %c0_i32_1 = arith.constant 0 : i32
    return %c0_i32, %c0_i32_0 : i32, i32
  }
  func.func @transform_2(%arg0: i32) -> (i32, i32) {
    %c0_i32 = arith.constant 0 : i32
    %c0_i32_0 = arith.constant 0 : i32
    %c0_i32_1 = arith.constant 0 : i32
    return %c0_i32, %c0_i32_0 : i32, i32
  }
  func.func @transform_3(%arg0: i32) -> (i32, i32) {
    %c0_i32 = arith.constant 0 : i32
    %c0_i32_0 = arith.constant 0 : i32
    return %arg0, %c0_i32 : i32, i32
  }
}

</mosaic_0001>

<llo_original>
// kernel: conv_bn2d.3
$region0: #{conv_bn2d.3}
  #allocation0 [shape = 'u32[]', space=smem, size = 0x4, offset = 0x4, fixed_abs, tag = 'smem constant byte address 0x4 - core index']
  #allocation1 [shape = 'u32[144,128]{1,0:T(1,128)}', space=vmem, size = 0x12000, scoped, tag = 'internal scratch']
  %s0 = inlined_call_operand.vmem [shape: f32[512,128], index: 0, kind: input, shape index: {}]
  %s1 = inlined_call_operand.vmem [shape: f32[1,128], index: 1, kind: input, shape index: {}]
  %s2 = inlined_call_operand.vmem [shape: f32[1,128], index: 2, kind: input, shape index: {}]
  %s3 = inlined_call_operand.vmem [shape: f32[512,128], index: 3, kind: output, shape index: {}]
  %s4 = sld [smem:[#allocation0]]
  $region22: #{conv_bn2d.3} parent=0
    _
  %s6 = ssub.s32 1, %s4
  %s7 = scalar_select 0, %s6, %s4
  // Predicated region
  $region2: #{conv_bn2d.3} parent=0 // pred_check
    _
  $region3: #{conv_bn2d.3} parent=0 // pred_check_branch
    %9 = sbr.rel (0) target = $region5
  $region4: #{conv_bn2d.3} parent=0 // pred_region
    _
  $region5: #{conv_bn2d.3} parent=0 // pred_fallthru
    _
  // Predicated region
  $region6: #{conv_bn2d.3} parent=0 // pred_check
    _
  $region7: #{conv_bn2d.3} parent=0 // pred_check_branch
    %11 = sbr.rel (0) target = $region9
  $region8: #{conv_bn2d.3} parent=0 // pred_region
    _
  $region9: #{conv_bn2d.3} parent=0 // pred_fallthru
    _
  // Predicated region
  $region10: #{conv_bn2d.3} parent=0 // pred_check
    _
  $region11: #{conv_bn2d.3} parent=0 // pred_check_branch
    %13 = sbr.rel (0) target = $region13
  $region12: #{conv_bn2d.3} parent=0 // pred_region
    _
  $region13: #{conv_bn2d.3} parent=0 // pred_fallthru
    _
  %v14 = vld [vmem:[%s0] sm:$0xff]
  %v15 = vld [vmem:[%s0 + $0x8] sm:$0xff]
  %v16 = vld [vmem:[%s0 + $0x10] sm:$0xff]
  %v17 = vld [vmem:[%s0 + $0x18] sm:$0xff]
  %v18 = vld [vmem:[%s0 + $0x20] sm:$0xff]
  %v19 = vld [vmem:[%s0 + $0x28] sm:$0xff]
  %v20 = vld [vmem:[%s0 + $0x30] sm:$0xff]
  %v21 = vld [vmem:[%s0 + $0x38] sm:$0xff]
  %v22 = vld [vmem:[%s0 + $0x40] sm:$0xff]
  %v23 = vld [vmem:[%s0 + $0x48] sm:$0xff]
  %v24 = vld [vmem:[%s0 + $0x50] sm:$0xff]
  %v25 = vld [vmem:[%s0 + $0x58] sm:$0xff]
  %v26 = vld [vmem:[%s0 + $0x60] sm:$0xff]
  %v27 = vld [vmem:[%s0 + $0x68] sm:$0xff]
  %v28 = vld [vmem:[%s0 + $0x70] sm:$0xff]
  %v29 = vld [vmem:[%s0 + $0x78] sm:$0xff]
  %v30 = vld [vmem:[%s0 + $0x80] sm:$0xff]
  %v31 = vld [vmem:[%s0 + $0x88] sm:$0xff]
  %v32 = vld [vmem:[%s0 + $0x90] sm:$0xff]
  %v33 = vld [vmem:[%s0 + $0x98] sm:$0xff]
  %v34 = vld [vmem:[%s0 + $0xa0] sm:$0xff]
  %v35 = vld [vmem:[%s0 + $0xa8] sm:$0xff]
  %v36 = vld [vmem:[%s0 + $0xb0] sm:$0xff]
  %v37 = vld [vmem:[%s0 + $0xb8] sm:$0xff]
  %v38 = vld [vmem:[%s0 + $0xc0] sm:$0xff]
  %v39 = vld [vmem:[%s0 + $0xc8] sm:$0xff]
  %v40 = vld [vmem:[%s0 + $0xd0] sm:$0xff]
  %v41 = vld [vmem:[%s0 + $0xd8] sm:$0xff]
  %v42 = vld [vmem:[%s0 + $0xe0] sm:$0xff]
  %v43 = vld [vmem:[%s0 + $0xe8] sm:$0xff]
  %v44 = vld [vmem:[%s0 + $0xf0] sm:$0xff]
  %v45 = vld [vmem:[%s0 + $0xf8] sm:$0xff]
  %v46 = vld [vmem:[%s0 + $0x100] sm:$0xff]
  %v47 = vld [vmem:[%s0 + $0x108] sm:$0xff]
  %v48 = vld [vmem:[%s0 + $0x110] sm:$0xff]
  %v49 = vld [vmem:[%s0 + $0x118] sm:$0xff]
  %v50 = vld [vmem:[%s0 + $0x120] sm:$0xff]
  %v51 = vld [vmem:[%s0 + $0x128] sm:$0xff]
  %v52 = vld [vmem:[%s0 + $0x130] sm:$0xff]
  %v53 = vld [vmem:[%s0 + $0x138] sm:$0xff]
  %v54 = vld [vmem:[%s0 + $0x140] sm:$0xff]
  %v55 = vld [vmem:[%s0 + $0x148] sm:$0xff]
  %v56 = vld [vmem:[%s0 + $0x150] sm:$0xff]
  %v57 = vld [vmem:[%s0 + $0x158] sm:$0xff]
  %v58 = vld [vmem:[%s0 + $0x160] sm:$0xff]
  %v59 = vld [vmem:[%s0 + $0x168] sm:$0xff]
  %v60 = vld [vmem:[%s0 + $0x170] sm:$0xff]
  %v61 = vld [vmem:[%s0 + $0x178] sm:$0xff]
  %v62 = vld [vmem:[%s0 + $0x180] sm:$0xff]
  %v63 = vld [vmem:[%s0 + $0x188] sm:$0xff]
  %v64 = vld [vmem:[%s0 + $0x190] sm:$0xff]
  %v65 = vld [vmem:[%s0 + $0x198] sm:$0xff]
  %v66 = vld [vmem:[%s0 + $0x1a0] sm:$0xff]
  %v67 = vld [vmem:[%s0 + $0x1a8] sm:$0xff]
  %v68 = vld [vmem:[%s0 + $0x1b0] sm:$0xff]
  %v69 = vld [vmem:[%s0 + $0x1b8] sm:$0xff]
  %v70 = vld [vmem:[%s0 + $0x1c0] sm:$0xff]
  %v71 = vld [vmem:[%s0 + $0x1c8] sm:$0xff]
  %v72 = vld [vmem:[%s0 + $0x1d0] sm:$0xff]
  %v73 = vld [vmem:[%s0 + $0x1d8] sm:$0xff]
  %v74 = vld [vmem:[%s0 + $0x1e0] sm:$0xff]
  %v75 = vld [vmem:[%s0 + $0x1e8] sm:$0xff]
  %v76 = vld [vmem:[%s0 + $0x1f0] sm:$0xff]
  %v77 = vld [vmem:[%s0 + $0x1f8] sm:$0xff]
  %v78 = vld [vmem:[%s1] sm:$0x1]
  %v80 = vlaneseq
  %v81 = vshrl.u32 %v80, 7
  %v82 = vsub.s32 0, %v81
  %v83 = vrot.slane %v78, %v82
  %v85 = vmul.f32 %v14, %v83
  %v86 = vmul.f32 %v15, %v83
  %v87 = vmul.f32 %v16, %v83
  %v88 = vmul.f32 %v17, %v83
  %v89 = vmul.f32 %v18, %v83
  %v90 = vmul.f32 %v19, %v83
  %v91 = vmul.f32 %v20, %v83
  %v92 = vmul.f32 %v21, %v83
  %v93 = vmul.f32 %v22, %v83
  %v94 = vmul.f32 %v23, %v83
  %v95 = vmul.f32 %v24, %v83
  %v96 = vmul.f32 %v25, %v83
  %v97 = vmul.f32 %v26, %v83
  %v98 = vmul.f32 %v27, %v83
  %v99 = vmul.f32 %v28, %v83
  %v100 = vmul.f32 %v29, %v83
  %v101 = vmul.f32 %v30, %v83
  %v102 = vmul.f32 %v31, %v83
  %v103 = vmul.f32 %v32, %v83
  %v104 = vmul.f32 %v33, %v83
  %v105 = vmul.f32 %v34, %v83
  %v106 = vmul.f32 %v35, %v83
  %v107 = vmul.f32 %v36, %v83
  %v108 = vmul.f32 %v37, %v83
  %v109 = vmul.f32 %v38, %v83
  %v110 = vmul.f32 %v39, %v83
  %v111 = vmul.f32 %v40, %v83
  %v112 = vmul.f32 %v41, %v83
  %v113 = vmul.f32 %v42, %v83
  %v114 = vmul.f32 %v43, %v83
  %v115 = vmul.f32 %v44, %v83
  %v116 = vmul.f32 %v45, %v83
  %v117 = vmul.f32 %v46, %v83
  %v118 = vmul.f32 %v47, %v83
  %v119 = vmul.f32 %v48, %v83
  %v120 = vmul.f32 %v49, %v83
  %v121 = vmul.f32 %v50, %v83
  %v122 = vmul.f32 %v51, %v83
  %v123 = vmul.f32 %v52, %v83
  %v124 = vmul.f32 %v53, %v83
  %v125 = vmul.f32 %v54, %v83
  %v126 = vmul.f32 %v55, %v83
  %v127 = vmul.f32 %v56, %v83
  %v128 = vmul.f32 %v57, %v83
  %v129 = vmul.f32 %v58, %v83
  %v130 = vmul.f32 %v59, %v83
  %v131 = vmul.f32 %v60, %v83
  %v132 = vmul.f32 %v61, %v83
  %v133 = vmul.f32 %v62, %v83
  %v134 = vmul.f32 %v63, %v83
  %v135 = vmul.f32 %v64, %v83
  %v136 = vmul.f32 %v65, %v83
  %v137 = vmul.f32 %v66, %v83
  %v138 = vmul.f32 %v67, %v83
  %v139 = vmul.f32 %v68, %v83
  %v140 = vmul.f32 %v69, %v83
  %v141 = vmul.f32 %v70, %v83
  %v142 = vmul.f32 %v71, %v83
  %v143 = vmul.f32 %v72, %v83
  %v144 = vmul.f32 %v73, %v83
  %v145 = vmul.f32 %v74, %v83
  %v146 = vmul.f32 %v75, %v83
  %v147 = vmul.f32 %v76, %v83
  %v148 = vmul.f32 %v77, %v83
  %v149 = vld [vmem:[%s2] sm:$0x1]
  %v151 = vlaneseq
  %v152 = vshrl.u32 %v151, 7
  %v153 = vsub.s32 0, %v152
  %v154 = vrot.slane %v149, %v153
  %v156 = vadd.f32 %v85, %v154
  %v157 = vadd.f32 %v86, %v154
  %v158 = vadd.f32 %v87, %v154
  %v159 = vadd.f32 %v88, %v154
  %v160 = vadd.f32 %v89, %v154
  %v161 = vadd.f32 %v90, %v154
  %v162 = vadd.f32 %v91, %v154
  %v163 = vadd.f32 %v92, %v154
  %v164 = vadd.f32 %v93, %v154
  %v165 = vadd.f32 %v94, %v154
  %v166 = vadd.f32 %v95, %v154
  %v167 = vadd.f32 %v96, %v154
  %v168 = vadd.f32 %v97, %v154
  %v169 = vadd.f32 %v98, %v154
  %v170 = vadd.f32 %v99, %v154
  %v171 = vadd.f32 %v100, %v154
  %v172 = vadd.f32 %v101, %v154
  %v173 = vadd.f32 %v102, %v154
  %v174 = vadd.f32 %v103, %v154
  %v175 = vadd.f32 %v104, %v154
  %v176 = vadd.f32 %v105, %v154
  %v177 = vadd.f32 %v106, %v154
  %v178 = vadd.f32 %v107, %v154
  %v179 = vadd.f32 %v108, %v154
  %v180 = vadd.f32 %v109, %v154
  %v181 = vadd.f32 %v110, %v154
  %v182 = vadd.f32 %v111, %v154
  %v183 = vadd.f32 %v112, %v154
  %v184 = vadd.f32 %v113, %v154
  %v185 = vadd.f32 %v114, %v154
  %v186 = vadd.f32 %v115, %v154
  %v187 = vadd.f32 %v116, %v154
  %v188 = vadd.f32 %v117, %v154
  %v189 = vadd.f32 %v118, %v154
  %v190 = vadd.f32 %v119, %v154
  %v191 = vadd.f32 %v120, %v154
  %v192 = vadd.f32 %v121, %v154
  %v193 = vadd.f32 %v122, %v154
  %v194 = vadd.f32 %v123, %v154
  %v195 = vadd.f32 %v124, %v154
  %v196 = vadd.f32 %v125, %v154
  %v197 = vadd.f32 %v126, %v154
  %v198 = vadd.f32 %v127, %v154
  %v199 = vadd.f32 %v128, %v154
  %v200 = vadd.f32 %v129, %v154
  %v201 = vadd.f32 %v130, %v154
  %v202 = vadd.f32 %v131, %v154
  %v203 = vadd.f32 %v132, %v154
  %v204 = vadd.f32 %v133, %v154
  %v205 = vadd.f32 %v134, %v154
  %v206 = vadd.f32 %v135, %v154
  %v207 = vadd.f32 %v136, %v154
  %v208 = vadd.f32 %v137, %v154
  %v209 = vadd.f32 %v138, %v154
  %v210 = vadd.f32 %v139, %v154
  %v211 = vadd.f32 %v140, %v154
  %v212 = vadd.f32 %v141, %v154
  %v213 = vadd.f32 %v142, %v154
  %v214 = vadd.f32 %v143, %v154
  %v215 = vadd.f32 %v144, %v154
  %v216 = vadd.f32 %v145, %v154
  %v217 = vadd.f32 %v146, %v154
  %v218 = vadd.f32 %v147, %v154
  %v219 = vadd.f32 %v148, %v154
  %220 = vst [vmem:[%s3] sm:$0xff] %v156
  %221 = vst [vmem:[%s3 + $0x8] sm:$0xff] %v157
  %222 = vst [vmem:[%s3 + $0x10] sm:$0xff] %v158
  %223 = vst [vmem:[%s3 + $0x18] sm:$0xff] %v159
  %224 = vst [vmem:[%s3 + $0x20] sm:$0xff] %v160
  %225 = vst [vmem:[%s3 + $0x28] sm:$0xff] %v161
  %226 = vst [vmem:[%s3 + $0x30] sm:$0xff] %v162
  %227 = vst [vmem:[%s3 + $0x38] sm:$0xff] %v163
  %228 = vst [vmem:[%s3 + $0x40] sm:$0xff] %v164
  %229 = vst [vmem:[%s3 + $0x48] sm:$0xff] %v165
  %230 = vst [vmem:[%s3 + $0x50] sm:$0xff] %v166
  %231 = vst [vmem:[%s3 + $0x58] sm:$0xff] %v167
  %232 = vst [vmem:[%s3 + $0x60] sm:$0xff] %v168
  %233 = vst [vmem:[%s3 + $0x68] sm:$0xff] %v169
  %234 = vst [vmem:[%s3 + $0x70] sm:$0xff] %v170
  %235 = vst [vmem:[%s3 + $0x78] sm:$0xff] %v171
  %236 = vst [vmem:[%s3 + $0x80] sm:$0xff] %v172
  %237 = vst [vmem:[%s3 + $0x88] sm:$0xff] %v173
  %238 = vst [vmem:[%s3 + $0x90] sm:$0xff] %v174
  %239 = vst [vmem:[%s3 + $0x98] sm:$0xff] %v175
  %240 = vst [vmem:[%s3 + $0xa0] sm:$0xff] %v176
  %241 = vst [vmem:[%s3 + $0xa8] sm:$0xff] %v177
  %242 = vst [vmem:[%s3 + $0xb0] sm:$0xff] %v178
  %243 = vst [vmem:[%s3 + $0xb8] sm:$0xff] %v179
  %244 = vst [vmem:[%s3 + $0xc0] sm:$0xff] %v180
  %245 = vst [vmem:[%s3 + $0xc8] sm:$0xff] %v181
  %246 = vst [vmem:[%s3 + $0xd0] sm:$0xff] %v182
  %247 = vst [vmem:[%s3 + $0xd8] sm:$0xff] %v183
  %248 = vst [vmem:[%s3 + $0xe0] sm:$0xff] %v184
  %249 = vst [vmem:[%s3 + $0xe8] sm:$0xff] %v185
  %250 = vst [vmem:[%s3 + $0xf0] sm:$0xff] %v186
  %251 = vst [vmem:[%s3 + $0xf8] sm:$0xff] %v187
  %252 = vst [vmem:[%s3 + $0x100] sm:$0xff] %v188
  %253 = vst [vmem:[%s3 + $0x108] sm:$0xff] %v189
  %254 = vst [vmem:[%s3 + $0x110] sm:$0xff] %v190
  %255 = vst [vmem:[%s3 + $0x118] sm:$0xff] %v191
  %256 = vst [vmem:[%s3 + $0x120] sm:$0xff] %v192
  %257 = vst [vmem:[%s3 + $0x128] sm:$0xff] %v193
  %258 = vst [vmem:[%s3 + $0x130] sm:$0xff] %v194
  %259 = vst [vmem:[%s3 + $0x138] sm:$0xff] %v195
  %260 = vst [vmem:[%s3 + $0x140] sm:$0xff] %v196
  %261 = vst [vmem:[%s3 + $0x148] sm:$0xff] %v197
  %262 = vst [vmem:[%s3 + $0x150] sm:$0xff] %v198
  %263 = vst [vmem:[%s3 + $0x158] sm:$0xff] %v199
  %264 = vst [vmem:[%s3 + $0x160] sm:$0xff] %v200
  %265 = vst [vmem:[%s3 + $0x168] sm:$0xff] %v201
  %266 = vst [vmem:[%s3 + $0x170] sm:$0xff] %v202
  %267 = vst [vmem:[%s3 + $0x178] sm:$0xff] %v203
  %268 = vst [vmem:[%s3 + $0x180] sm:$0xff] %v204
  %269 = vst [vmem:[%s3 + $0x188] sm:$0xff] %v205
  %270 = vst [vmem:[%s3 + $0x190] sm:$0xff] %v206
  %271 = vst [vmem:[%s3 + $0x198] sm:$0xff] %v207
  %272 = vst [vmem:[%s3 + $0x1a0] sm:$0xff] %v208
  %273 = vst [vmem:[%s3 + $0x1a8] sm:$0xff] %v209
  %274 = vst [vmem:[%s3 + $0x1b0] sm:$0xff] %v210
  %275 = vst [vmem:[%s3 + $0x1b8] sm:$0xff] %v211
  %276 = vst [vmem:[%s3 + $0x1c0] sm:$0xff] %v212
  %277 = vst [vmem:[%s3 + $0x1c8] sm:$0xff] %v213
  %278 = vst [vmem:[%s3 + $0x1d0] sm:$0xff] %v214
  %279 = vst [vmem:[%s3 + $0x1d8] sm:$0xff] %v215
  %280 = vst [vmem:[%s3 + $0x1e0] sm:$0xff] %v216
  %281 = vst [vmem:[%s3 + $0x1e8] sm:$0xff] %v217
  %282 = vst [vmem:[%s3 + $0x1f0] sm:$0xff] %v218
  %283 = vst [vmem:[%s3 + $0x1f8] sm:$0xff] %v219
  // Predicated region
  $region14: #{conv_bn2d.3} parent=0 // pred_check
    _
  $region15: #{conv_bn2d.3} parent=0 // pred_check_branch
    %285 = sbr.rel (0) target = $region17
  $region16: #{conv_bn2d.3} parent=0 // pred_region
    _
  $region17: #{conv_bn2d.3} parent=0 // pred_fallthru
    _
  // Predicated region
  $region18: #{conv_bn2d.3} parent=0 // pred_check
    _
  $region19: #{conv_bn2d.3} parent=0 // pred_check_branch
    %287 = sbr.rel (0) target = $region21
  $region20: #{conv_bn2d.3} parent=0 // pred_region
    _
  $region21: #{conv_bn2d.3} parent=0 // pred_fallthru
    _

// kernel: conv_bn2d.2
$region0: #{conv_bn2d.2}
  #allocation0 [shape = 'u32[]', space=smem, size = 0x4, offset = 0x4, fixed_abs, tag = 'smem constant byte address 0x4 - core index']
  #allocation1 [shape = 'u32[144,128]{1,0:T(1,128)}', space=vmem, size = 0x12000, scoped, tag = 'internal scratch']
  %s0 = inlined_call_operand.vmem [shape: f32[2,18,18,4], index: 0, kind: input, shape index: {}, may-alias: {0,1,2}]
  %s1 = inlined_call_operand.vmem [shape: f32[2,18,18,4], index: 1, kind: input, shape index: {}, may-alias: {0,1,2}]
  %s2 = inlined_call_operand.vmem [shape: f32[2,18,18,4], index: 2, kind: input, shape index: {}, may-alias: {0,1,2}]
  %s3 = inlined_call_operand.vmem [shape: f32[3,3,4,128], index: 3, kind: input, shape index: {}]
  %s4 = inlined_call_operand.vmem [shape: f32[512,128], index: 4, kind: output, shape index: {0}]
  %s5 = inlined_call_operand.vmem [shape: f32[8,8,128], index: 5, kind: output, shape index: {1}]
  %6 = xla_tuple %s4, %s5
  %s7 = sld [smem:[#allocation0]]
  $region57: #{conv_bn2d.2} parent=0
    _
  %s9 = ssub.s32 1, %s7
  %s10 = scalar_select 0, %s9, %s7
  loop: start=0, step=1, limit=10
  $region2: #{conv_bn2d.2} parent=0 // loop_pre_header
    _
  $region3: #{conv_bn2d.2} parent=0 // loop_header
    %s12 = sphi 0, %s16
    %p13 = scmp.ge.s32.totalorder %s12, 10
    %s19 = sphi 0, %s31
    %s20 = sphi 0, %s27
    %s21 = sphi 0, %s19
    %s22 = sphi 0, %s20
    %s23 = sphi 0, %s21
    %s24 = sphi 0, %s22
    %s36 = sphi 0, %s38
    %s39 = sphi 0, %s36
    %s40 = sphi 0, %s39
    %s56 = sphi 0, %s40
    %s68 = sphi 0, %s70
    %s71 = sphi 0, %s68
    %s72 = sphi 0, %s71
    %s88 = sphi 0, %s72
    %s100 = sphi 0, %s102
    %s103 = sphi 0, %s100
    %s104 = sphi 0, %s103
    %s120 = sphi 0, %s104
    %s124 = sphi 0, %s124
    %s126 = sphi 0, %s124
    %s127 = sphi 0, %s126
    %s141 = sphi 0, %s127
    %s151 = sphi 0, %s153
    %s154 = sphi 0, %s151
    %s155 = sphi 0, %s154
    %s171 = sphi 0, %s155
    %s181 = sphi 0, %s183
    %s184 = sphi 0, %s181
    %s185 = sphi 0, %s184
    %s201 = sphi 0, %s185
  $region4: #{conv_bn2d.2} parent=0 // loop_header_branch
    %15 = sbr.rel (%p13) target = $region8
  $region5: #{conv_bn2d.2} parent=0 // loop_body
    %s17 = ssub.s32 %s12, 1
    %s18 = ssub.s32 %s12, 2
    %s25 = sadd.s32 1, %s20
    %p26 = scmp.ge.s32.totalorder %s25, 4
    %s27 = scalar_select %p26, 0, %s25
    %s28 = sadd.s32 1, %s19
    %s29 = scalar_select %p26, %s28, %s19
    %p30 = scmp.ge.s32.totalorder %s29, 2
    %s31 = scalar_select %p30, 0, %s29
    %s32 = ssub.s32 %s19, %s31
    %s33 = ssub.s32 %s20, %s27
    %s34 = sor.u32 %s32, %s33
    %p35 = scmp.eq.s32.totalorder %s34, 0
    %s37 = sadd.s32 %s36, 1
    %s38 = scalar_select %p35, %s36, %s37
    %p41 = pneg %p35
    %p42 = scmp.eq.s32.totalorder %s12, 7
    %p43 = por %p41, %p42
    %p44 = scmp.ne.s32.totalorder %s36, %s39
    %p45 = scmp.eq.s32.totalorder %s12, 0
    %p46 = por %p44, %p45
    %p47 = scmp.ne.s32.totalorder %s36, %s39
    %p48 = scmp.eq.s32.totalorder %s17, 7
    %p49 = por %p47, %p48
    %p50 = scmp.ne.s32.totalorder %s39, %s40
    %p51 = scmp.eq.s32.totalorder %s17, 0
    %p52 = por %p50, %p51
    %p53 = scmp.ne.s32.totalorder %s39, %s40
    %p54 = scmp.eq.s32.totalorder %s18, 7
    %p55 = por %p53, %p54
    %p57 = scmp.ne.s32.totalorder %s40, %s56
    %p58 = scmp.eq.s32.totalorder %s18, 0
    %p59 = por %p57, %p58
    %s60 = smul.u32 %s20, 4
    %s61 = sadd.s32 %s60, 4
    %s62 = smul.u32 %s27, 4
    %s63 = sadd.s32 %s62, 4
    %s64 = ssub.s32 %s19, %s31
    %s65 = ssub.s32 %s61, %s63
    %s66 = sor.u32 %s64, %s65
    %p67 = scmp.eq.s32.totalorder %s66, 0
    %s69 = sadd.s32 %s68, 1
    %s70 = scalar_select %p67, %s68, %s69
    %p73 = pneg %p67
    %p74 = scmp.eq.s32.totalorder %s12, 7
    %p75 = por %p73, %p74
    %p76 = scmp.ne.s32.totalorder %s68, %s71
    %p77 = scmp.eq.s32.totalorder %s12, 0
    %p78 = por %p76, %p77
    %p79 = scmp.ne.s32.totalorder %s68, %s71
    %p80 = scmp.eq.s32.totalorder %s17, 7
    %p81 = por %p79, %p80
    %p82 = scmp.ne.s32.totalorder %s71, %s72
    %p83 = scmp.eq.s32.totalorder %s17, 0
    %p84 = por %p82, %p83
    %p85 = scmp.ne.s32.totalorder %s71, %s72
    %p86 = scmp.eq.s32.totalorder %s18, 7
    %p87 = por %p85, %p86
    %p89 = scmp.ne.s32.totalorder %s72, %s88
    %p90 = scmp.eq.s32.totalorder %s18, 0
    %p91 = por %p89, %p90
    %s92 = smul.u32 %s20, 4
    %s93 = sadd.s32 %s92, 5
    %s94 = smul.u32 %s27, 4
    %s95 = sadd.s32 %s94, 5
    %s96 = ssub.s32 %s19, %s31
    %s97 = ssub.s32 %s93, %s95
    %s98 = sor.u32 %s96, %s97
    %p99 = scmp.eq.s32.totalorder %s98, 0
    %s101 = sadd.s32 %s100, 1
    %s102 = scalar_select %p99, %s100, %s101
    %p105 = pneg %p99
    %p106 = scmp.eq.s32.totalorder %s12, 7
    %p107 = por %p105, %p106
    %p108 = scmp.ne.s32.totalorder %s100, %s103
    %p109 = scmp.eq.s32.totalorder %s12, 0
    %p110 = por %p108, %p109
    %p111 = scmp.ne.s32.totalorder %s100, %s103
    %p112 = scmp.eq.s32.totalorder %s17, 7
    %p113 = por %p111, %p112
    %p114 = scmp.ne.s32.totalorder %s103, %s104
    %p115 = scmp.eq.s32.totalorder %s17, 0
    %p116 = por %p114, %p115
    %p117 = scmp.ne.s32.totalorder %s103, %s104
    %p118 = scmp.eq.s32.totalorder %s18, 7
    %p119 = por %p117, %p118
    %p121 = scmp.ne.s32.totalorder %s104, %s120
    %p122 = scmp.eq.s32.totalorder %s18, 0
    %p123 = por %p121, %p122
    %s125 = sadd.s32 %s124, 1
    %p128 = scmp.eq.s32.totalorder %s12, 7
    %p129 = scmp.ne.s32.totalorder %s124, %s126
    %p130 = scmp.eq.s32.totalorder %s12, 0
    %p131 = por %p129, %p130
    %p132 = scmp.ne.s32.totalorder %s124, %s126
    %p133 = scmp.eq.s32.totalorder %s17, 7
    %p134 = por %p132, %p133
    %p135 = scmp.ne.s32.totalorder %s126, %s127
    %p136 = scmp.eq.s32.totalorder %s17, 0
    %p137 = por %p135, %p136
    %p138 = scmp.ne.s32.totalorder %s126, %s127
    %p139 = scmp.eq.s32.totalorder %s18, 7
    %p140 = por %p138, %p139
    %p142 = scmp.ne.s32.totalorder %s127, %s141
    %p143 = scmp.eq.s32.totalorder %s18, 0
    %p144 = por %p142, %p143
    %s145 = smul.u32 %s19, 4
    %s146 = sadd.s32 %s145, %s20
    %s147 = smul.u32 %s31, 4
    %s148 = sadd.s32 %s147, %s27
    %s149 = ssub.s32 %s146, %s148
    %p150 = scmp.eq.s32.totalorder %s149, 0
    %s152 = sadd.s32 %s151, 1
    %s153 = scalar_select %p150, %s151, %s152
    %p156 = pneg %p150
    %p157 = scmp.eq.s32.totalorder %s12, 7
    %p158 = por %p156, %p157
    %p159 = scmp.ne.s32.totalorder %s151, %s154
    %p160 = scmp.eq.s32.totalorder %s12, 0
    %p161 = por %p159, %p160
    %p162 = scmp.ne.s32.totalorder %s151, %s154
    %p163 = scmp.eq.s32.totalorder %s17, 7
    %p164 = por %p162, %p163
    %p165 = scmp.ne.s32.totalorder %s154, %s155
    %p166 = scmp.eq.s32.totalorder %s17, 0
    %p167 = por %p165, %p166
    %p168 = scmp.ne.s32.totalorder %s154, %s155
    %p169 = scmp.eq.s32.totalorder %s18, 7
    %p170 = por %p168, %p169
    %p172 = scmp.ne.s32.totalorder %s155, %s171
    %p173 = scmp.eq.s32.totalorder %s18, 0
    %p174 = por %p172, %p173
    %s175 = smul.u32 %s19, 4
    %s176 = sadd.s32 %s175, %s20
    %s177 = smul.u32 %s31, 4
    %s178 = sadd.s32 %s177, %s27
    %s179 = ssub.s32 %s176, %s178
    %p180 = scmp.eq.s32.totalorder %s179, 0
    %s182 = sadd.s32 %s181, 1
    %s183 = scalar_select %p180, %s181, %s182
    %p186 = pneg %p180
    %p187 = scmp.eq.s32.totalorder %s12, 7
    %p188 = por %p186, %p187
    %p189 = scmp.ne.s32.totalorder %s181, %s184
    %p190 = scmp.eq.s32.totalorder %s12, 0
    %p191 = por %p189, %p190
    %p192 = scmp.ne.s32.totalorder %s181, %s184
    %p193 = scmp.eq.s32.totalorder %s17, 7
    %p194 = por %p192, %p193
    %p195 = scmp.ne.s32.totalorder %s184, %s185
    %p196 = scmp.eq.s32.totalorder %s17, 0
    %p197 = por %p195, %p196
    %p198 = scmp.ne.s32.totalorder %s184, %s185
    %p199 = scmp.eq.s32.totalorder %s18, 7
    %p200 = por %p198, %p199
    %p202 = scmp.ne.s32.totalorder %s185, %s201
    %p203 = scmp.eq.s32.totalorder %s18, 0
    %p204 = por %p202, %p203
    %p205 = scmp.le.s32.totalorder 1, %s12
    %p206 = scmp.lt.s32.totalorder %s12, 9
    %p207 = pnand %p205, %p206
    %p208 = pneg %p207
    // Predicated region
    $region9: #{conv_bn2d.2} parent=5 // pred_check
      _
    $region10: #{conv_bn2d.2} parent=5 // pred_check_branch
      %210 = sbr.rel (%p207) target = $region12
    $region11: #{conv_bn2d.2} parent=5 // pred_region
      %s211 = ssub.s32 %s12, 1
      // Predicated region
      $region13: #{conv_bn2d.2} parent=11 // pred_check
        %p212 = pneg %p137
      $region14: #{conv_bn2d.2} parent=11 // pred_check_branch
        %214 = sbr.rel (%p212) target = $region16
      $region15: #{conv_bn2d.2} parent=11 // pred_region
        _
      $region16: #{conv_bn2d.2} parent=11 // pred_fallthru
        _
    $region12: #{conv_bn2d.2} parent=5 // pred_fallthru
      _
    %p215 = scmp.lt.s32.totalorder %s12, 8
    // Predicated region
    $region17: #{conv_bn2d.2} parent=5 // pred_check
      %p216 = pneg %p215
    $region18: #{conv_bn2d.2} parent=5 // pred_check_branch
      %218 = sbr.rel (%p216) target = $region20
    $region19: #{conv_bn2d.2} parent=5 // pred_region
      // Predicated region
      $region21: #{conv_bn2d.2} parent=19 // pred_check
        %p219 = pneg %p46
      $region22: #{conv_bn2d.2} parent=19 // pred_check_branch
        %221 = sbr.rel (%p219) target = $region24
      $region23: #{conv_bn2d.2} parent=19 // pred_region
        %s222 = smul.u32 4, %s20
        %s223 = ssub.s32 18, %s222
        %p224 = scmp.lt.s32.totalorder %s223, 4
        %s225 = scalar_select %p224, %s223, 4
        %s226 = smul.u32 128, %s225
        %s227 = smul.u32 %s226, 3
        %p228 = scmp.lt.s32.totalorder %s19, 1
        %s229 = scalar_select %p228, %s19, 1
        %p230 = scmp.lt.s32.totalorder %s222, 17
        %s231 = scalar_select %p230, %s222, 17
        %s232 = smul.addr %s231, 3
        %s233 = smul.addr %s229, 54
        %s234 = sadd.s32 %s232, %s233
        %s235 = smul.addr %s234, 8
        %s236 = scalar_lea.vmem %s0, %s235
        %s237 = smul.u32 4, %s20
        %s238 = ssub.s32 18, %s237
        %p239 = scmp.lt.s32.totalorder %s238, 4
        %s240 = scalar_select %p239, %s238, 4
        %s241 = smul.u32 128, %s240
        %s242 = smul.u32 %s241, 3
      $region24: #{conv_bn2d.2} parent=19 // pred_fallthru
        _
      // Predicated region
      $region25: #{conv_bn2d.2} parent=19 // pred_check
        %p243 = pneg %p78
      $region26: #{conv_bn2d.2} parent=19 // pred_check_branch
        %245 = sbr.rel (%p243) target = $region28
      $region27: #{conv_bn2d.2} parent=19 // pred_region
        %s246 = smul.u32 %s20, 4
        %s247 = sadd.s32 %s246, 4
        %p248 = scmp.lt.s32.totalorder %s19, 1
        %s249 = scalar_select %p248, %s19, 1
        %p250 = scmp.lt.s32.totalorder %s247, 17
        %s251 = scalar_select %p250, %s247, 17
        %s252 = smul.addr %s251, 3
        %s253 = smul.addr %s249, 54
        %s254 = sadd.s32 %s252, %s253
        %s255 = smul.addr %s254, 8
        %s256 = scalar_lea.vmem %s1, %s255
        %s257 = smul.u32 %s20, 4
        %s258 = sadd.s32 %s257, 4
      $region28: #{conv_bn2d.2} parent=19 // pred_fallthru
        _
      // Predicated region
      $region29: #{conv_bn2d.2} parent=19 // pred_check
        %p259 = pneg %p110
      $region30: #{conv_bn2d.2} parent=19 // pred_check_branch
        %261 = sbr.rel (%p259) target = $region32
      $region31: #{conv_bn2d.2} parent=19 // pred_region
        %s262 = smul.u32 %s20, 4
        %s263 = sadd.s32 %s262, 5
        %p264 = scmp.lt.s32.totalorder %s19, 1
        %s265 = scalar_select %p264, %s19, 1
        %p266 = scmp.lt.s32.totalorder %s263, 17
        %s267 = scalar_select %p266, %s263, 17
        %s268 = smul.addr %s267, 3
        %s269 = smul.addr %s265, 54
        %s270 = sadd.s32 %s268, %s269
        %s271 = smul.addr %s270, 8
        %s272 = scalar_lea.vmem %s2, %s271
        %s273 = smul.u32 %s20, 4
        %s274 = sadd.s32 %s273, 5
      $region32: #{conv_bn2d.2} parent=19 // pred_fallthru
        _
    $region20: #{conv_bn2d.2} parent=5 // pred_fallthru
      _
    %p275 = scmp.le.s32.totalorder 1, %s12
    %p276 = scmp.lt.s32.totalorder %s12, 9
    %p277 = pnand %p275, %p276
    %p278 = pneg %p277
    // Predicated region
    $region33: #{conv_bn2d.2} parent=5 // pred_check
      _
    $region34: #{conv_bn2d.2} parent=5 // pred_check_branch
      %280 = sbr.rel (%p277) target = $region36
    $region35: #{conv_bn2d.2} parent=5 // pred_region
      %s281 = ssub.s32 %s12, 1
      %s282 = smul.u32 4, %s22
      %s283 = ssub.s32 18, %s282
      %p284 = scmp.lt.s32.totalorder %s283, 4
      %s285 = scalar_select %p284, %s283, 4
      %s286 = smul.u32 128, %s285
      %s287 = smul.u32 %s286, 3
      %p288 = scmp.lt.s32.totalorder %s21, 1
      %s289 = scalar_select %p288, %s21, 1
      %p290 = scmp.lt.s32.totalorder %s282, 17
      %s291 = scalar_select %p290, %s282, 17
      %s292 = smul.addr %s291, 3
      %s293 = smul.addr %s289, 54
      %s294 = sadd.s32 %s292, %s293
      %s295 = smul.addr %s294, 8
      %s296 = scalar_lea.vmem %s0, %s295
      %p297 = pneg %p52
      %p298 = pneg %p49
      %s299 = smul.u32 %s22, 4
      %s300 = sadd.s32 %s299, 4
      %p301 = scmp.lt.s32.totalorder %s21, 1
      %s302 = scalar_select %p301, %s21, 1
      %p303 = scmp.lt.s32.totalorder %s300, 17
      %s304 = scalar_select %p303, %s300, 17
      %s305 = smul.addr %s304, 3
      %s306 = smul.addr %s302, 54
      %s307 = sadd.s32 %s305, %s306
      %s308 = smul.addr %s307, 8
      %s309 = scalar_lea.vmem %s1, %s308
      %p310 = pneg %p84
      %p311 = pneg %p81
      %s312 = smul.u32 %s22, 4
      %s313 = sadd.s32 %s312, 5
      %p314 = scmp.lt.s32.totalorder %s21, 1
      %s315 = scalar_select %p314, %s21, 1
      %p316 = scmp.lt.s32.totalorder %s313, 17
      %s317 = scalar_select %p316, %s313, 17
      %s318 = smul.addr %s317, 3
      %s319 = smul.addr %s315, 54
      %s320 = sadd.s32 %s318, %s319
      %s321 = smul.addr %s320, 8
      %s322 = scalar_lea.vmem %s2, %s321
      %p323 = pneg %p116
      %p324 = pneg %p113
      %p325 = pneg %p137
      %p326 = pneg %p134
      %p327 = pneg %p167
      %p328 = pneg %p164
      %s329 = smul.u32 %s21, 4
      %s330 = sadd.s32 %s329, %s22
      %s331 = smul.u32 8, %s330
      %p332 = scmp.lt.s32.totalorder %s331, 63
      %s333 = scalar_select %p332, %s331, 63
      %s334 = smul.addr %s333, 8
      %s335 = scalar_lea.vmem %s4, %s334
      %p336 = pneg %p197
      %p337 = pneg %p194
      %s338 = smul.u32 %s21, 4
      %s339 = sadd.s32 %s338, %s22
      %p340 = scmp.lt.s32.totalorder %s339, 7
      %s341 = scalar_select %p340, %s339, 7
      %s342 = smul.addr %s341, 8
      %s343 = scalar_lea.vmem %s5, %s342
      %s344 = smul.u32 4, %s22
      %s345 = ssub.s32 18, %s344
      %p346 = scmp.lt.s32.totalorder %s345, 4
      %s347 = scalar_select %p346, %s345, 4
      %s348 = smul.u32 128, %s347
      %s349 = smul.u32 %s348, 3
      %p350 = scmp.lt.s32.totalorder %s21, 1
      %s351 = scalar_select %p350, %s21, 1
      %p352 = scmp.lt.s32.totalorder %s344, 17
      %s353 = scalar_select %p352, %s344, 17
      %s354 = smul.addr %s353, 3
      %s355 = smul.addr %s351, 54
      %s356 = sadd.s32 %s354, %s355
      %s357 = smul.addr %s356, 8
      %s358 = scalar_lea.vmem %s0, %s357
      %s359 = smul.u32 4, %s22
      %s360 = ssub.s32 18, %s359
      %p361 = scmp.lt.s32.totalorder %s360, 4
      %s362 = scalar_select %p361, %s360, 4
      %s363 = smul.u32 128, %s362
      %s364 = smul.u32 %s363, 3
      %s365 = smul.u32 %s22, 4
      %s366 = sadd.s32 %s365, 4
      %p367 = scmp.lt.s32.totalorder %s21, 1
      %s368 = scalar_select %p367, %s21, 1
      %p369 = scmp.lt.s32.totalorder %s366, 17
      %s370 = scalar_select %p369, %s366, 17
      %s371 = smul.addr %s370, 3
      %s372 = smul.addr %s368, 54
      %s373 = sadd.s32 %s371, %s372
      %s374 = smul.addr %s373, 8
      %s375 = scalar_lea.vmem %s1, %s374
      %s376 = smul.u32 %s22, 4
      %s377 = sadd.s32 %s376, 4
      %s378 = smul.u32 %s22, 4
      %s379 = sadd.s32 %s378, 5
      %p380 = scmp.lt.s32.totalorder %s21, 1
      %s381 = scalar_select %p380, %s21, 1
      %p382 = scmp.lt.s32.totalorder %s379, 17
      %s383 = scalar_select %p382, %s379, 17
      %s384 = smul.addr %s383, 3
      %s385 = smul.addr %s381, 54
      %s386 = sadd.s32 %s384, %s385
      %s387 = smul.addr %s386, 8
      %s388 = scalar_lea.vmem %s2, %s387
      %s389 = smul.u32 %s22, 4
      %s390 = sadd.s32 %s389, 5
      %s391 = smul.u32 %s21, 4
      %s392 = sadd.s32 %s391, %s22
      %s393 = smul.u32 8, %s392
      %p394 = scmp.lt.s32.totalorder %s393, 63
      %s395 = scalar_select %p394, %s393, 63
      %s396 = smul.addr %s395, 8
      %s397 = scalar_lea.vmem %s4, %s396
      %s398 = smul.u32 %s21, 4
      %s399 = sadd.s32 %s398, %s22
      %s400 = smul.u32 8, %s399
      %s401 = smul.u32 %s21, 4
      %s402 = sadd.s32 %s401, %s22
      %p403 = scmp.lt.s32.totalorder %s402, 7
      %s404 = scalar_select %p403, %s402, 7
      %s405 = smul.addr %s404, 8
      %s406 = scalar_lea.vmem %s5, %s405
      %s407 = smul.u32 %s21, 4
      %s408 = sadd.s32 %s407, %s22
      %v409 = vld [vmem:[%s358] sm:$0xff]
      %v410 = vld [vmem:[%s358 + $0x8] sm:$0xff]
      %v411 = vld [vmem:[%s358 + $0x10] sm:$0x3]
      %v412 = vld [vmem:[%s358 + $0x18] sm:$0xff]
      %v413 = vld [vmem:[%s358 + $0x20] sm:$0xff]
      %v414 = vld [vmem:[%s358 + $0x28] sm:$0x3]
      %v415 = vld [vmem:[%s358 + $0x30] sm:$0xff]
      %v416 = vld [vmem:[%s358 + $0x38] sm:$0xff]
      %v417 = vld [vmem:[%s358 + $0x40] sm:$0x3]
      %v418 = vld [vmem:[%s358 + $0x48] sm:$0xff]
      %v419 = vld [vmem:[%s358 + $0x50] sm:$0xff]
      %v420 = vld [vmem:[%s358 + $0x58] sm:$0x3]
      %v421 = vld [vmem:[%s375] sm:$0xff]
      %v422 = vld [vmem:[%s375 + $0x8] sm:$0xff]
      %v423 = vld [vmem:[%s375 + $0x10] sm:$0x3]
      %v424 = vld [vmem:[%s388] sm:$0xff]
      %v425 = vld [vmem:[%s388 + $0x8] sm:$0xff]
      %v426 = vld [vmem:[%s388 + $0x10] sm:$0x3]
      %v427 = vld [vmem:[%s3] sm:$0xf]
      %vm440 = vcmask 1046528
      %v441 = vrot.slane %v409, 1
      %v442 = vrot.slane %v410, 1
      %v443 = vsel %vm440, %v441, %v442
      %v444 = vrot.slane %v411, 1
      %v445 = vsel %vm440, %v442, %v444
      %v446 = vrot.slane %v412, 1
      %v447 = vrot.slane %v413, 1
      %v448 = vsel %vm440, %v446, %v447
      %v449 = vrot.slane %v414, 1
      %v450 = vsel %vm440, %v447, %v449
      %v451 = vrot.slane %v415, 1
      %v452 = vrot.slane %v416, 1
      %v453 = vsel %vm440, %v451, %v452
      %v454 = vrot.slane %v417, 1
      %v455 = vsel %vm440, %v452, %v454
      %v456 = vrot.slane %v418, 1
      %v457 = vrot.slane %v419, 1
      %v458 = vsel %vm440, %v456, %v457
      %v459 = vrot.slane %v420, 1
      %v460 = vsel %vm440, %v457, %v459
      %s461 = scalar_lea.vmem %s3, 4
      %v462 = vld [vmem:[%s461] sm:$0xf]
      %vm463 = vcmask 31744
      %v464 = vsel %vm463, %v443, 0
      %v466 = vsel %vm463, %v445, 0
      %v468 = vsel %vm463, %v448, 0
      %v470 = vsel %vm463, %v450, 0
      %v472 = vsel %vm463, %v453, 0
      %v474 = vsel %vm463, %v455, 0
      %v476 = vsel %vm463, %v458, 0
      %v478 = vsel %vm463, %v460, 0
      %vm480 = vcmask 1043456
      %v482 = vsel %vm480, %v462, 0
      %484 = vmatprep.subr.mxu0 0.0
      %485 = vmatpush1.msra.mxu0 %v482
      %486 = vmatprep.subr.mxu0 0.0
      %487 = vmatpush1.msra.mxu0 0.0
      %488 = vmatprep.subr.mxu0 0.0
      %489 = vmatpush1.msra.mxu0 0.0
      %490 = vmatprep.subr.mxu0 0.0
      %491 = vmatpush1.msra.mxu0 0.0
      %492 = vmatprep.subr.mxu0 0.0
      %493 = vmatpush1.msra.mxu0 0.0
      %494 = vmatprep.subr.mxu0 0.0
      %495 = vmatpush1.msra.mxu0 0.0
      %496 = vmatprep.subr.mxu0 0.0
      %497 = vmatpush1.msra.mxu0 0.0
      %498 = vmatprep.subr.mxu0 0.0
      %499 = vmatpush1.msra.mxu0 0.0
      %500 = vmatprep.subr.mxu0 0.0
      %501 = vmatpush1.msra.mxu0 0.0
      %502 = vmatprep.subr.mxu0 0.0
      %503 = vmatpush1.msra.mxu0 0.0
      %504 = vmatprep.subr.mxu0 0.0
      %505 = vmatpush1.msra.mxu0 0.0
      %506 = vmatprep.subr.mxu0 0.0
      %507 = vmatpush1.msra.mxu0 0.0
      %508 = vmatprep.subr.mxu0 0.0
      %509 = vmatpush1.msra.mxu0 0.0
      %510 = vmatprep.subr.mxu0 0.0
      %511 = vmatpush1.msra.mxu0 0.0
      %512 = vmatprep.subr.mxu0 0.0
      %513 = vmatpush1.msra.mxu0 0.0
      %514 = vmatprep.subr.mxu0 0.0
      %515 = vmatpush1.msra.mxu0 0.0
      %516 = vmatprep.subr.mxu0 0.0
      %517 = vmatpush1.msra.mxu0 0.0
      %518 = vmatprep.subr.mxu0 0.0
      %519 = vmatpush1.msra.mxu0 0.0
      %520 = vmatprep.subr.mxu0 0.0
      %521 = vmatpush1.msra.mxu0 0.0
      %522 = vmatprep.subr.mxu0 0.0
      %523 = vmatpush1.msra.mxu0 0.0
      %524 = vmatprep.subr.mxu0 0.0
      %525 = vmatpush1.msra.mxu0 0.0
      %526 = vmatprep.subr.mxu0 0.0
      %527 = vmatpush1.msra.mxu0 0.0
      %528 = vmatprep.subr.mxu0 0.0
      %529 = vmatpush1.msra.mxu0 0.0
      %530 = vmatprep.subr.mxu0 0.0
      %531 = vmatpush1.msra.mxu0 0.0
      %532 = vmatprep.subr.mxu0 0.0
      %533 = vmatpush1.msra.mxu0 0.0
      %534 = vmatprep.subr.mxu0 0.0
      %535 = vmatpush1.msra.mxu0 0.0
      %536 = vmatprep.subr.mxu0 0.0
      %537 = vmatpush1.msra.mxu0 0.0
      %538 = vmatprep.subr.mxu0 0.0
      %539 = vmatpush1.msra.mxu0 0.0
      %540 = vmatprep.subr.mxu0 0.0
      %541 = vmatpush1.msra.mxu0 0.0
      %542 = vmatprep.subr.mxu0 0.0
      %543 = vmatpush1.msra.mxu0 0.0
      %544 = vmatprep.subr.mxu0 0.0
      %545 = vmatpush1.msra.mxu0 0.0
      %546 = vmatprep.subr.mxu0 0.0
      %547 = vmatpush1.msra.mxu0 0.0
      %548 = vmatprep.mubr.f32.mxu0 0.0
      %549 = vmatmul.mubr.f32.gmra.mrb[0].mxu0 %v464
      %v550 = vpop.f32.mrb[0].mxu0
      %v551 = vadd.f32 0.0, %v550
      %v552 = vpop.f32.mrb[0].mxu0
      %553 = vmatprep.mubr.f32.mxu0 0.0
      %554 = vmatmul.mubr.f32.gmra.mrb[0].mxu0 %v466
      %v555 = vpop.f32.mrb[0].mxu0
      %v556 = vadd.f32 0.0, %v555
      %v557 = vpop.f32.mrb[0].mxu0
      %558 = vmatprep.mubr.f32.mxu0 0.0
      %559 = vmatmul.mubr.f32.gmra.mrb[0].mxu0 %v468
      %v560 = vpop.f32.mrb[0].mxu0
      %v561 = vadd.f32 0.0, %v560
      %v562 = vpop.f32.mrb[0].mxu0
      %563 = vmatprep.mubr.f32.mxu0 0.0
      %564 = vmatmul.mubr.f32.gmra.mrb[0].mxu0 %v470
      %v565 = vpop.f32.mrb[0].mxu0
      %v566 = vadd.f32 0.0, %v565
      %v567 = vpop.f32.mrb[0].mxu0
      %568 = vmatprep.mubr.f32.mxu0 0.0
      %569 = vmatmul.mubr.f32.gmra.mrb[0].mxu0 %v472
      %v570 = vpop.f32.mrb[0].mxu0
      %v571 = vadd.f32 0.0, %v570
      %v572 = vpop.f32.mrb[0].mxu0
      %573 = vmatprep.mubr.f32.mxu0 0.0
      %574 = vmatmul.mubr.f32.gmra.mrb[0].mxu0 %v474
      %v575 = vpop.f32.mrb[0].mxu0
      %v576 = vadd.f32 0.0, %v575
      %v577 = vpop.f32.mrb[0].mxu0
      %578 = vmatprep.mubr.f32.mxu0 0.0
      %579 = vmatmul.mubr.f32.gmra.mrb[0].mxu0 %v476
      %v580 = vpop.f32.mrb[0].mxu0
      %v581 = vadd.f32 0.0, %v580
      %v582 = vpop.f32.mrb[0].mxu0
      %583 = vmatprep.mubr.f32.mxu0 0.0
      %584 = vmatmul.mubr.f32.gmra.mrb[0].mxu0 %v478
      %v585 = vpop.f32.mrb[0].mxu0
      %v586 = vadd.f32 0.0, %v585
      %v587 = vpop.f32.mrb[0].mxu0
      %588 = vdwg.mxu0
      %v589 = vsel %vm463, %v409, 0
      %v591 = vsel %vm463, %v410, 0
      %v593 = vsel %vm463, %v412, 0
      %v595 = vsel %vm463, %v413, 0
      %v597 = vsel %vm463, %v415, 0
      %v599 = vsel %vm463, %v416, 0
      %v601 = vsel %vm463, %v418, 0
      %v603 = vsel %vm463, %v419, 0
      %v606 = vsel %vm480, %v427, 0
      %608 = vmatprep.subr.mxu0 0.0
      %609 = vmatpush1.msra.mxu0 %v606
      %610 = vmatprep.subr.mxu0 0.0
      %611 = vmatpush1.msra.mxu0 0.0
      %612 = vmatprep.subr.mxu0 0.0
      %613 = vmatpush1.msra.mxu0 0.0
      %614 = vmatprep.subr.mxu0 0.0
      %615 = vmatpush1.msra.mxu0 0.0
      %616 = vmatprep.subr.mxu0 0.0
      %617 = vmatpush1.msra.mxu0 0.0
      %618 = vmatprep.subr.mxu0 0.0
      %619 = vmatpush1.msra.mxu0 0.0
      %620 = vmatprep.subr.mxu0 0.0
      %621 = vmatpush1.msra.mxu0 0.0
      %622 = vmatprep.subr.mxu0 0.0
      %623 = vmatpush1.msra.mxu0 0.0
      %624 = vmatprep.subr.mxu0 0.0
      %625 = vmatpush1.msra.mxu0 0.0
      %626 = vmatprep.subr.mxu0 0.0
      %627 = vmatpush1.msra.mxu0 0.0
      %628 = vmatprep.subr.mxu0 0.0
      %629 = vmatpush1.msra.mxu0 0.0
      %630 = vmatprep.subr.mxu0 0.0
      %631 = vmatpush1.msra.mxu0 0.0
      %632 = vmatprep.subr.mxu0 0.0
      %633 = vmatpush1.msra.mxu0 0.0
      %634 = vmatprep.subr.mxu0 0.0
      %635 = vmatpush1.msra.mxu0 0.0
      %636 = vmatprep.subr.mxu0 0.0
      %637 = vmatpush1.msra.mxu0 0.0
      %638 = vmatprep.subr.mxu0 0.0
      %639 = vmatpush1.msra.mxu0 0.0
      %640 = vmatprep.subr.mxu0 0.0
      %641 = vmatpush1.msra.mxu0 0.0
      %642 = vmatprep.subr.mxu0 0.0
      %643 = vmatpush1.msra.mxu0 0.0
      %644 = vmatprep.subr.mxu0 0.0
      %645 = vmatpush1.msra.mxu0 0.0
      %646 = vmatprep.subr.mxu0 0.0
      %647 = vmatpush1.msra.mxu0 0.0
      %648 = vmatprep.subr.mxu0 0.0
      %649 = vmatpush1.msra.mxu0 0.0
      %650 = vmatprep.subr.mxu0 0.0
      %651 = vmatpush1.msra.mxu0 0.0
      %652 = vmatprep.subr.mxu0 0.0
      %653 = vmatpush1.msra.mxu0 0.0
      %654 = vmatprep.subr.mxu0 0.0
      %655 = vmatpush1.msra.mxu0 0.0
      %656 = vmatprep.subr.mxu0 0.0
      %657 = vmatpush1.msra.mxu0 0.0
      %658 = vmatprep.subr.mxu0 0.0
      %659 = vmatpush1.msra.mxu0 0.0
      %660 = vmatprep.subr.mxu0 0.0
      %661 = vmatpush1.msra.mxu0 0.0
      %662 = vmatprep.subr.mxu0 0.0
      %663 = vmatpush1.msra.mxu0 0.0
      %664 = vmatprep.subr.mxu0 0.0
      %665 = vmatpush1.msra.mxu0 0.0
      %666 = vmatprep.subr.mxu0 0.0
      %667 = vmatpush1.msra.mxu0 0.0
      %668 = vmatprep.subr.mxu0 0.0
      %669 = vmatpush1.msra.mxu0 0.0
      %670 = vmatprep.subr.mxu0 0.0
      %671 = vmatpush1.msra.mxu0 0.0
      %672 = vmatprep.mubr.f32.mxu0 0.0
      %673 = vmatmul.mubr.f32.gmra.mrb[0].mxu0 %v589
      %v674 = vpop.f32.mrb[0].mxu0
      %v675 = vadd.f32 %v551, %v674
      %v676 = vpop.f32.mrb[0].mxu0
      %677 = vmatprep.mubr.f32.mxu0 0.0
      %678 = vmatmul.mubr.f32.gmra.mrb[0].mxu0 %v591
      %v679 = vpop.f32.mrb[0].mxu0
      %v680 = vadd.f32 %v556, %v679
      %v681 = vpop.f32.mrb[0].mxu0
      %682 = vmatprep.mubr.f32.mxu0 0.0
      %683 = vmatmul.mubr.f32.gmra.mrb[0].mxu0 %v593
      %v684 = vpop.f32.mrb[0].mxu0
      %v685 = vadd.f32 %v561, %v684
      %v686 = vpop.f32.mrb[0].mxu0
      %687 = vmatprep.mubr.f32.mxu0 0.0
      %688 = vmatmul.mubr.f32.gmra.mrb[0].mxu0 %v595
      %v689 = vpop.f32.mrb[0].mxu0
      %v690 = vadd.f32 %v566, %v689
      %v691 = vpop.f32.mrb[0].mxu0
      %692 = vmatprep.mubr.f32.mxu0 0.0
      %693 = vmatmul.mubr.f32.gmra.mrb[0].mxu0 %v597
      %v694 = vpop.f32.mrb[0].mxu0
      %v695 = vadd.f32 %v571, %v694
      %v696 = vpop.f32.mrb[0].mxu0
      %697 = vmatprep.mubr.f32.mxu0 0.0
      %698 = vmatmul.mubr.f32.gmra.mrb[0].mxu0 %v599
      %v699 = vpop.f32.mrb[0].mxu0
      %v700 = vadd.f32 %v576, %v699
      %v701 = vpop.f32.mrb[0].mxu0
      %702 = vmatprep.mubr.f32.mxu0 0.0
      %703 = vmatmul.mubr.f32.gmra.mrb[0].mxu0 %v601
      %v704 = vpop.f32.mrb[0].mxu0
      %v705 = vadd.f32 %v581, %v704
      %v706 = vpop.f32.mrb[0].mxu0
      %707 = vmatprep.mubr.f32.mxu0 0.0
      %708 = vmatmul.mubr.f32.gmra.mrb[0].mxu0 %v603
      %v709 = vpop.f32.mrb[0].mxu0
      %v710 = vadd.f32 %v586, %v709
      %v711 = vpop.f32.mrb[0].mxu0
      %712 = vdwg.mxu0
      %vm713 = vcmask 1045504
      %v714 = vrot.slane %v409, 2
      %v715 = vrot.slane %v410, 2
      %v716 = vsel %vm713, %v714, %v715
      %v717 = vrot.slane %v411, 2
      %v718 = vsel %vm713, %v715, %v717
      %v719 = vrot.slane %v412, 2
      %v720 = vrot.slane %v413, 2
      %v721 = vsel %vm713, %v719, %v720
      %v722 = vrot.slane %v414, 2
      %v723 = vsel %vm713, %v720, %v722
      %v724 = vrot.slane %v415, 2
      %v725 = vrot.slane %v416, 2
      %v726 = vsel %vm713, %v724, %v725
      %v727 = vrot.slane %v417, 2
      %v728 = vsel %vm713, %v725, %v727
      %v729 = vrot.slane %v418, 2
      %v730 = vrot.slane %v419, 2
      %v731 = vsel %vm713, %v729, %v730
      %v732 = vrot.slane %v420, 2
      %v733 = vsel %vm713, %v730, %v732
      %s734 = scalar_lea.vmem %s3, 8
      %v735 = vld [vmem:[%s734] sm:$0xf]
      %v736 = vsel %vm463, %v716, 0
      %v738 = vsel %vm463, %v718, 0
      %v740 = vsel %vm463, %v721, 0
      %v742 = vsel %vm463, %v723, 0
      %v744 = vsel %vm463, %v726, 0
      %v746 = vsel %vm463, %v728, 0
      %v748 = vsel %vm463, %v731, 0
      %v750 = vsel %vm463, %v733, 0
      %v753 = vsel %vm480, %v735, 0
      %755 = vmatprep.subr.mxu0 0.0
      %756 = vmatpush1.msra.mxu0 %v753
      %757 = vmatprep.subr.mxu0 0.0
      %758 = vmatpush1.msra.mxu0 0.0
      %759 = vmatprep.subr.mxu0 0.0
      %760 = vmatpush1.msra.mxu0 0.0
      %761 = vmatprep.subr.mxu0 0.0
      %762 = vmatpush1.msra.mxu0 0.0
      %763 = vmatprep.subr.mxu0 0.0
      %764 = vmatpush1.msra.mxu0 0.0
      %765 = vmatprep.subr.mxu0 0.0
      %766 = vmatpush1.msra.mxu0 0.0
      %767 = vmatprep.subr.mxu0 0.0
      %768 = vmatpush1.msra.mxu0 0.0
      %769 = vmatprep.subr.mxu0 0.0
      %770 = vmatpush1.msra.mxu0 0.0
      %771 = vmatprep.subr.mxu0 0.0
      %772 = vmatpush1.msra.mxu0 0.0
      %773 = vmatprep.subr.mxu0 0.0
      %774 = vmatpush1.msra.mxu0 0.0
      %775 = vmatprep.subr.mxu0 0.0
      %776 = vmatpush1.msra.mxu0 0.0
      %777 = vmatprep.subr.mxu0 0.0
      %778 = vmatpush1.msra.mxu0 0.0
      %779 = vmatprep.subr.mxu0 0.0
      %780 = vmatpush1.msra.mxu0 0.0
      %781 = vmatprep.subr.mxu0 0.0
      %782 = vmatpush1.msra.mxu0 0.0
      %783 = vmatprep.subr.mxu0 0.0
      %784 = vmatpush1.msra.mxu0 0.0
      %785 = vmatprep.subr.mxu0 0.0
      %786 = vmatpush1.msra.mxu0 0.0
      %787 = vmatprep.subr.mxu0 0.0
      %788 = vmatpush1.msra.mxu0 0.0
      %789 = vmatprep.subr.mxu0 0.0
      %790 = vmatpush1.msra.mxu0 0.0
      %791 = vmatprep.subr.mxu0 0.0
      %792 = vmatpush1.msra.mxu0 0.0
      %793 = vmatprep.subr.mxu0 0.0
      %794 = vmatpush1.msra.mxu0 0.0
      %795 = vmatprep.subr.mxu0 0.0
      %796 = vmatpush1.msra.mxu0 0.0
      %797 = vmatprep.subr.mxu0 0.0
      %798 = vmatpush1.msra.mxu0 0.0
      %799 = vmatprep.subr.mxu0 0.0
      %800 = vmatpush1.msra.mxu0 0.0
      %801 = vmatprep.subr.mxu0 0.0
      %802 = vmatpush1.msra.mxu0 0.0
      %803 = vmatprep.subr.mxu0 0.0
      %804 = vmatpush1.msra.mxu0 0.0
      %805 = vmatprep.subr.mxu0 0.0
      %806 = vmatpush1.msra.mxu0 0.0
      %807 = vmatprep.subr.mxu0 0.0
      %808 = vmatpush1.msra.mxu0 0.0
      %809 = vmatprep.subr.mxu0 0.0
      %810 = vmatpush1.msra.mxu0 0.0
      %811 = vmatprep.subr.mxu0 0.0
      %812 = vmatpush1.msra.mxu0 0.0
      %813 = vmatprep.subr.mxu0 0.0
      %814 = vmatpush1.msra.mxu0 0.0
      %815 = vmatprep.subr.mxu0 0.0
      %816 = vmatpush1.msra.mxu0 0.0
      %817 = vmatprep.subr.mxu0 0.0
      %818 = vmatpush1.msra.mxu0 0.0
      %819 = vmatprep.mubr.f32.mxu0 0.0
      %820 = vmatmul.mubr.f32.gmra.mrb[0].mxu0 %v736
      %v821 = vpop.f32.mrb[0].mxu0
      %v822 = vadd.f32 0.0, %v821
      %v823 = vpop.f32.mrb[0].mxu0
      %824 = vmatprep.mubr.f32.mxu0 0.0
      %825 = vmatmul.mubr.f32.gmra.mrb[0].mxu0 %v738
      %v826 = vpop.f32.mrb[0].mxu0
      %v827 = vadd.f32 0.0, %v826
      %v828 = vpop.f32.mrb[0].mxu0
      %829 = vmatprep.mubr.f32.mxu0 0.0
      %830 = vmatmul.mubr.f32.gmra.mrb[0].mxu0 %v740
      %v831 = vpop.f32.mrb[0].mxu0
      %v832 = vadd.f32 0.0, %v831
      %v833 = vpop.f32.mrb[0].mxu0
      %834 = vmatprep.mubr.f32.mxu0 0.0
      %835 = vmatmul.mubr.f32.gmra.mrb[0].mxu0 %v742
      %v836 = vpop.f32.mrb[0].mxu0
      %v837 = vadd.f32 0.0, %v836
      %v838 = vpop.f32.mrb[0].mxu0
      %839 = vmatprep.mubr.f32.mxu0 0.0
      %840 = vmatmul.mubr.f32.gmra.mrb[0].mxu0 %v744
      %v841 = vpop.f32.mrb[0].mxu0
      %v842 = vadd.f32 0.0, %v841
      %v843 = vpop.f32.mrb[0].mxu0
      %844 = vmatprep.mubr.f32.mxu0 0.0
      %845 = vmatmul.mubr.f32.gmra.mrb[0].mxu0 %v746
      %v846 = vpop.f32.mrb[0].mxu0
      %v847 = vadd.f32 0.0, %v846
      %v848 = vpop.f32.mrb[0].mxu0
      %849 = vmatprep.mubr.f32.mxu0 0.0
      %850 = vmatmul.mubr.f32.gmra.mrb[0].mxu0 %v748
      %v851 = vpop.f32.mrb[0].mxu0
      %v852 = vadd.f32 0.0, %v851
      %v853 = vpop.f32.mrb[0].mxu0
      %854 = vmatprep.mubr.f32.mxu0 0.0
      %855 = vmatmul.mubr.f32.gmra.mrb[0].mxu0 %v750
      %v856 = vpop.f32.mrb[0].mxu0
      %v857 = vadd.f32 0.0, %v856
      %v858 = vpop.f32.mrb[0].mxu0
      %859 = vdwg.mxu0
      %v860 = vadd.f32 %v675, %v822
      %v861 = vadd.f32 %v680, %v827
      %v862 = vadd.f32 %v685, %v832
      %v863 = vadd.f32 %v690, %v837
      %v864 = vadd.f32 %v695, %v842
      %v865 = vadd.f32 %v700, %v847
      %v866 = vadd.f32 %v705, %v852
      %v867 = vadd.f32 %v710, %v857
      %s868 = scalar_lea.vmem %s3, 12
      %v869 = vld [vmem:[%s868] sm:$0xf]
      %v871 = vsel %vm463, %v421, 0
      %v874 = vsel %vm463, %v422, 0
      %v877 = vsel %vm480, %v869, 0
      %879 = vmatprep.subr.mxu0 0.0
      %880 = vmatpush1.msra.mxu0 %v877
      %881 = vmatprep.subr.mxu0 0.0
      %882 = vmatpush1.msra.mxu0 0.0
      %883 = vmatprep.subr.mxu0 0.0
      %884 = vmatpush1.msra.mxu0 0.0
      %885 = vmatprep.subr.mxu0 0.0
      %886 = vmatpush1.msra.mxu0 0.0
      %887 = vmatprep.subr.mxu0 0.0
      %888 = vmatpush1.msra.mxu0 0.0
      %889 = vmatprep.subr.mxu0 0.0
      %890 = vmatpush1.msra.mxu0 0.0
      %891 = vmatprep.subr.mxu0 0.0
      %892 = vmatpush1.msra.mxu0 0.0
      %893 = vmatprep.subr.mxu0 0.0
      %894 = vmatpush1.msra.mxu0 0.0
      %895 = vmatprep.subr.mxu0 0.0
      %896 = vmatpush1.msra.mxu0 0.0
      %897 = vmatprep.subr.mxu0 0.0
      %898 = vmatpush1.msra.mxu0 0.0
      %899 = vmatprep.subr.mxu0 0.0
      %900 = vmatpush1.msra.mxu0 0.0
      %901 = vmatprep.subr.mxu0 0.0
      %902 = vmatpush1.msra.mxu0 0.0
      %903 = vmatprep.subr.mxu0 0.0
      %904 = vmatpush1.msra.mxu0 0.0
      %905 = vmatprep.subr.mxu0 0.0
      %906 = vmatpush1.msra.mxu0 0.0
      %907 = vmatprep.subr.mxu0 0.0
      %908 = vmatpush1.msra.mxu0 0.0
      %909 = vmatprep.subr.mxu0 0.0
      %910 = vmatpush1.msra.mxu0 0.0
      %911 = vmatprep.subr.mxu0 0.0
      %912 = vmatpush1.msra.mxu0 0.0
      %913 = vmatprep.subr.mxu0 0.0
      %914 = vmatpush1.msra.mxu0 0.0
      %915 = vmatprep.subr.mxu0 0.0
      %916 = vmatpush1.msra.mxu0 0.0
      %917 = vmatprep.subr.mxu0 0.0
      %918 = vmatpush1.msra.mxu0 0.0
      %919 = vmatprep.subr.mxu0 0.0
      %920 = vmatpush1.msra.mxu0 0.0
      %921 = vmatprep.subr.mxu0 0.0
      %922 = vmatpush1.msra.mxu0 0.0
      %923 = vmatprep.subr.mxu0 0.0
      %924 = vmatpush1.msra.mxu0 0.0
      %925 = vmatprep.subr.mxu0 0.0
      %926 = vmatpush1.msra.mxu0 0.0
      %927 = vmatprep.subr.mxu0 0.0
      %928 = vmatpush1.msra.mxu0 0.0
      %929 = vmatprep.subr.mxu0 0.0
      %930 = vmatpush1.msra.mxu0 0.0
      %931 = vmatprep.subr.mxu0 0.0
      %932 = vmatpush1.msra.mxu0 0.0
      %933 = vmatprep.subr.mxu0 0.0
      %934 = vmatpush1.msra.mxu0 0.0
      %935 = vmatprep.subr.mxu0 0.0
      %936 = vmatpush1.msra.mxu0 0.0
      %937 = vmatprep.subr.mxu0 0.0
      %938 = vmatpush1.msra.mxu0 0.0
      %939 = vmatprep.subr.mxu0 0.0
      %940 = vmatpush1.msra.mxu0 0.0
      %941 = vmatprep.subr.mxu0 0.0
      %942 = vmatpush1.msra.mxu0 0.0
      %943 = vmatprep.mubr.f32.mxu0 0.0
      %944 = vmatmul.mubr.f32.gmra.mrb[0].mxu0 %v593
      %v945 = vpop.f32.mrb[0].mxu0
      %v946 = vadd.f32 0.0, %v945
      %v947 = vpop.f32.mrb[0].mxu0
      %948 = vmatprep.mubr.f32.mxu0 0.0
      %949 = vmatmul.mubr.f32.gmra.mrb[0].mxu0 %v595
      %v950 = vpop.f32.mrb[0].mxu0
      %v951 = vadd.f32 0.0, %v950
      %v952 = vpop.f32.mrb[0].mxu0
      %953 = vmatprep.mubr.f32.mxu0 0.0
      %954 = vmatmul.mubr.f32.gmra.mrb[0].mxu0 %v597
      %v955 = vpop.f32.mrb[0].mxu0
      %v956 = vadd.f32 0.0, %v955
      %v957 = vpop.f32.mrb[0].mxu0
      %958 = vmatprep.mubr.f32.mxu0 0.0
      %959 = vmatmul.mubr.f32.gmra.mrb[0].mxu0 %v599
      %v960 = vpop.f32.mrb[0].mxu0
      %v961 = vadd.f32 0.0, %v960
      %v962 = vpop.f32.mrb[0].mxu0
      %963 = vmatprep.mubr.f32.mxu0 0.0
      %964 = vmatmul.mubr.f32.gmra.mrb[0].mxu0 %v601
      %v965 = vpop.f32.mrb[0].mxu0
      %v966 = vadd.f32 0.0, %v965
      %v967 = vpop.f32.mrb[0].mxu0
      %968 = vmatprep.mubr.f32.mxu0 0.0
      %969 = vmatmul.mubr.f32.gmra.mrb[0].mxu0 %v603
      %v970 = vpop.f32.mrb[0].mxu0
      %v971 = vadd.f32 0.0, %v970
      %v972 = vpop.f32.mrb[0].mxu0
      %973 = vmatprep.mubr.f32.mxu0 0.0
      %974 = vmatmul.mubr.f32.gmra.mrb[0].mxu0 %v871
      %v975 = vpop.f32.mrb[0].mxu0
      %v976 = vadd.f32 0.0, %v975
      %v977 = vpop.f32.mrb[0].mxu0
      %978 = vmatprep.mubr.f32.mxu0 0.0
      %979 = vmatmul.mubr.f32.gmra.mrb[0].mxu0 %v874
      %v980 = vpop.f32.mrb[0].mxu0
      %v981 = vadd.f32 0.0, %v980
      %v982 = vpop.f32.mrb[0].mxu0
      %983 = vdwg.mxu0
      %v984 = vadd.f32 %v860, %v946
      %v985 = vadd.f32 %v861, %v951
      %v986 = vadd.f32 %v862, %v956
      %v987 = vadd.f32 %v863, %v961
      %v988 = vadd.f32 %v864, %v966
      %v989 = vadd.f32 %v865, %v971
      %v990 = vadd.f32 %v866, %v976
      %v991 = vadd.f32 %v867, %v981
      %v993 = vrot.slane %v421, 1
      %v994 = vrot.slane %v422, 1
      %v995 = vsel %vm440, %v993, %v994
      %v996 = vrot.slane %v423, 1
      %v997 = vsel %vm440, %v994, %v996
      %s998 = scalar_lea.vmem %s3, 16
      %v999 = vld [vmem:[%s998] sm:$0xf]
      %v1000 = vsel %vm463, %v995, 0
      %v1002 = vsel %vm463, %v997, 0
      %v1005 = vsel %vm480, %v999, 0
      %1007 = vmatprep.subr.mxu0 0.0
      %1008 = vmatpush1.msra.mxu0 %v1005
      %1009 = vmatprep.subr.mxu0 0.0
      %1010 = vmatpush1.msra.mxu0 0.0
      %1011 = vmatprep.subr.mxu0 0.0
      %1012 = vmatpush1.msra.mxu0 0.0
      %1013 = vmatprep.subr.mxu0 0.0
      %1014 = vmatpush1.msra.mxu0 0.0
      %1015 = vmatprep.subr.mxu0 0.0
      %1016 = vmatpush1.msra.mxu0 0.0
      %1017 = vmatprep.subr.mxu0 0.0
      %1018 = vmatpush1.msra.mxu0 0.0
      %1019 = vmatprep.subr.mxu0 0.0
      %1020 = vmatpush1.msra.mxu0 0.0
      %1021 = vmatprep.subr.mxu0 0.0
      %1022 = vmatpush1.msra.mxu0 0.0
      %1023 = vmatprep.subr.mxu0 0.0
      %1024 = vmatpush1.msra.mxu0 0.0
      %1025 = vmatprep.subr.mxu0 0.0
      %1026 = vmatpush1.msra.mxu0 0.0
      %1027 = vmatprep.subr.mxu0 0.0
      %1028 = vmatpush1.msra.mxu0 0.0
      %1029 = vmatprep.subr.mxu0 0.0
      %1030 = vmatpush1.msra.mxu0 0.0
      %1031 = vmatprep.subr.mxu0 0.0
      %1032 = vmatpush1.msra.mxu0 0.0
      %1033 = vmatprep.subr.mxu0 0.0
      %1034 = vmatpush1.msra.mxu0 0.0
      %1035 = vmatprep.subr.mxu0 0.0
      %1036 = vmatpush1.msra.mxu0 0.0
      %1037 = vmatprep.subr.mxu0 0.0
      %1038 = vmatpush1.msra.mxu0 0.0
      %1039 = vmatprep.subr.mxu0 0.0
      %1040 = vmatpush1.msra.mxu0 0.0
      %1041 = vmatprep.subr.mxu0 0.0
      %1042 = vmatpush1.msra.mxu0 0.0
      %1043 = vmatprep.subr.mxu0 0.0
      %1044 = vmatpush1.msra.mxu0 0.0
      %1045 = vmatprep.subr.mxu0 0.0
      %1046 = vmatpush1.msra.mxu0 0.0
      %1047 = vmatprep.subr.mxu0 0.0
      %1048 = vmatpush1.msra.mxu0 0.0
      %1049 = vmatprep.subr.mxu0 0.0
      %1050 = vmatpush1.msra.mxu0 0.0
      %1051 = vmatprep.subr.mxu0 0.0
      %1052 = vmatpush1.msra.mxu0 0.0
      %1053 = vmatprep.subr.mxu0 0.0
      %1054 = vmatpush1.msra.mxu0 0.0
      %1055 = vmatprep.subr.mxu0 0.0
      %1056 = vmatpush1.msra.mxu0 0.0
      %1057 = vmatprep.subr.mxu0 0.0
      %1058 = vmatpush1.msra.mxu0 0.0
      %1059 = vmatprep.subr.mxu0 0.0
      %1060 = vmatpush1.msra.mxu0 0.0
      %1061 = vmatprep.subr.mxu0 0.0
      %1062 = vmatpush1.msra.mxu0 0.0
      %1063 = vmatprep.subr.mxu0 0.0
      %1064 = vmatpush1.msra.mxu0 0.0
      %1065 = vmatprep.subr.mxu0 0.0
      %1066 = vmatpush1.msra.mxu0 0.0
      %1067 = vmatprep.subr.mxu0 0.0
      %1068 = vmatpush1.msra.mxu0 0.0
      %1069 = vmatprep.subr.mxu0 0.0
      %1070 = vmatpush1.msra.mxu0 0.0
      %1071 = vmatprep.mubr.f32.mxu0 0.0
      %1072 = vmatmul.mubr.f32.gmra.mrb[0].mxu0 %v468
      %v1073 = vpop.f32.mrb[0].mxu0
      %v1074 = vadd.f32 0.0, %v1073
      %v1075 = vpop.f32.mrb[0].mxu0
      %1076 = vmatprep.mubr.f32.mxu0 0.0
      %1077 = vmatmul.mubr.f32.gmra.mrb[0].mxu0 %v470
      %v1078 = vpop.f32.mrb[0].mxu0
      %v1079 = vadd.f32 0.0, %v1078
      %v1080 = vpop.f32.mrb[0].mxu0
      %1081 = vmatprep.mubr.f32.mxu0 0.0
      %1082 = vmatmul.mubr.f32.gmra.mrb[0].mxu0 %v472
      %v1083 = vpop.f32.mrb[0].mxu0
      %v1084 = vadd.f32 0.0, %v1083
      %v1085 = vpop.f32.mrb[0].mxu0
      %1086 = vmatprep.mubr.f32.mxu0 0.0
      %1087 = vmatmul.mubr.f32.gmra.mrb[0].mxu0 %v474
      %v1088 = vpop.f32.mrb[0].mxu0
      %v1089 = vadd.f32 0.0, %v1088
      %v1090 = vpop.f32.mrb[0].mxu0
      %1091 = vmatprep.mubr.f32.mxu0 0.0
      %1092 = vmatmul.mubr.f32.gmra.mrb[0].mxu0 %v476
      %v1093 = vpop.f32.mrb[0].mxu0
      %v1094 = vadd.f32 0.0, %v1093
      %v1095 = vpop.f32.mrb[0].mxu0
      %1096 = vmatprep.mubr.f32.mxu0 0.0
      %1097 = vmatmul.mubr.f32.gmra.mrb[0].mxu0 %v478
      %v1098 = vpop.f32.mrb[0].mxu0
      %v1099 = vadd.f32 0.0, %v1098
      %v1100 = vpop.f32.mrb[0].mxu0
      %1101 = vmatprep.mubr.f32.mxu0 0.0
      %1102 = vmatmul.mubr.f32.gmra.mrb[0].mxu0 %v1000
      %v1103 = vpop.f32.mrb[0].mxu0
      %v1104 = vadd.f32 0.0, %v1103
      %v1105 = vpop.f32.mrb[0].mxu0
      %1106 = vmatprep.mubr.f32.mxu0 0.0
      %1107 = vmatmul.mubr.f32.gmra.mrb[0].mxu0 %v1002
      %v1108 = vpop.f32.mrb[0].mxu0
      %v1109 = vadd.f32 0.0, %v1108
      %v1110 = vpop.f32.mrb[0].mxu0
      %1111 = vdwg.mxu0
      %v1112 = vadd.f32 %v984, %v1074
      %v1113 = vadd.f32 %v985, %v1079
      %v1114 = vadd.f32 %v986, %v1084
      %v1115 = vadd.f32 %v987, %v1089
      %v1116 = vadd.f32 %v988, %v1094
      %v1117 = vadd.f32 %v989, %v1099
      %v1118 = vadd.f32 %v990, %v1104
      %v1119 = vadd.f32 %v991, %v1109
      %v1120 = vrot.slane %v421, 2
      %v1121 = vrot.slane %v422, 2
      %v1122 = vsel %vm713, %v1120, %v1121
      %v1123 = vrot.slane %v423, 2
      %v1124 = vsel %vm713, %v1121, %v1123
      %s1125 = scalar_lea.vmem %s3, 20
      %v1126 = vld [vmem:[%s1125] sm:$0xf]
      %v1127 = vsel %vm463, %v1122, 0
      %v1129 = vsel %vm463, %v1124, 0
      %v1132 = vsel %vm480, %v1126, 0
      %1134 = vmatprep.subr.mxu0 0.0
      %1135 = vmatpush1.msra.mxu0 %v1132
      %1136 = vmatprep.subr.mxu0 0.0
      %1137 = vmatpush1.msra.mxu0 0.0
      %1138 = vmatprep.subr.mxu0 0.0
      %1139 = vmatpush1.msra.mxu0 0.0
      %1140 = vmatprep.subr.mxu0 0.0
      %1141 = vmatpush1.msra.mxu0 0.0
      %1142 = vmatprep.subr.mxu0 0.0
      %1143 = vmatpush1.msra.mxu0 0.0
      %1144 = vmatprep.subr.mxu0 0.0
      %1145 = vmatpush1.msra.mxu0 0.0
      %1146 = vmatprep.subr.mxu0 0.0
      %1147 = vmatpush1.msra.mxu0 0.0
      %1148 = vmatprep.subr.mxu0 0.0
      %1149 = vmatpush1.msra.mxu0 0.0
      %1150 = vmatprep.subr.mxu0 0.0
      %1151 = vmatpush1.msra.mxu0 0.0
      %1152 = vmatprep.subr.mxu0 0.0
      %1153 = vmatpush1.msra.mxu0 0.0
      %1154 = vmatprep.subr.mxu0 0.0
      %1155 = vmatpush1.msra.mxu0 0.0
      %1156 = vmatprep.subr.mxu0 0.0
      %1157 = vmatpush1.msra.mxu0 0.0
      %1158 = vmatprep.subr.mxu0 0.0
      %1159 = vmatpush1.msra.mxu0 0.0
      %1160 = vmatprep.subr.mxu0 0.0
      %1161 = vmatpush1.msra.mxu0 0.0
      %1162 = vmatprep.subr.mxu0 0.0
      %1163 = vmatpush1.msra.mxu0 0.0
      %1164 = vmatprep.subr.mxu0 0.0
      %1165 = vmatpush1.msra.mxu0 0.0
      %1166 = vmatprep.subr.mxu0 0.0
      %1167 = vmatpush1.msra.mxu0 0.0
      %1168 = vmatprep.subr.mxu0 0.0
      %1169 = vmatpush1.msra.mxu0 0.0
      %1170 = vmatprep.subr.mxu0 0.0
      %1171 = vmatpush1.msra.mxu0 0.0
      %1172 = vmatprep.subr.mxu0 0.0
      %1173 = vmatpush1.msra.mxu0 0.0
      %1174 = vmatprep.subr.mxu0 0.0
      %1175 = vmatpush1.msra.mxu0 0.0
      %1176 = vmatprep.subr.mxu0 0.0
      %1177 = vmatpush1.msra.mxu0 0.0
      %1178 = vmatprep.subr.mxu0 0.0
      %1179 = vmatpush1.msra.mxu0 0.0
      %1180 = vmatprep.subr.mxu0 0.0
      %1181 = vmatpush1.msra.mxu0 0.0
      %1182 = vmatprep.subr.mxu0 0.0
      %1183 = vmatpush1.msra.mxu0 0.0
      %1184 = vmatprep.subr.mxu0 0.0
      %1185 = vmatpush1.msra.mxu0 0.0
      %1186 = vmatprep.subr.mxu0 0.0
      %1187 = vmatpush1.msra.mxu0 0.0
      %1188 = vmatprep.subr.mxu0 0.0
      %1189 = vmatpush1.msra.mxu0 0.0
      %1190 = vmatprep.subr.mxu0 0.0
      %1191 = vmatpush1.msra.mxu0 0.0
      %1192 = vmatprep.subr.mxu0 0.0
      %1193 = vmatpush1.msra.mxu0 0.0
      %1194 = vmatprep.subr.mxu0 0.0
      %1195 = vmatpush1.msra.mxu0 0.0
      %1196 = vmatprep.subr.mxu0 0.0
      %1197 = vmatpush1.msra.mxu0 0.0
      %1198 = vmatprep.mubr.f32.mxu0 0.0
      %1199 = vmatmul.mubr.f32.gmra.mrb[0].mxu0 %v740
      %v1200 = vpop.f32.mrb[0].mxu0
      %v1201 = vadd.f32 0.0, %v1200
      %v1202 = vpop.f32.mrb[0].mxu0
      %1203 = vmatprep.mubr.f32.mxu0 0.0
      %1204 = vmatmul.mubr.f32.gmra.mrb[0].mxu0 %v742
      %v1205 = vpop.f32.mrb[0].mxu0
      %v1206 = vadd.f32 0.0, %v1205
      %v1207 = vpop.f32.mrb[0].mxu0
      %1208 = vmatprep.mubr.f32.mxu0 0.0
      %1209 = vmatmul.mubr.f32.gmra.mrb[0].mxu0 %v744
      %v1210 = vpop.f32.mrb[0].mxu0
      %v1211 = vadd.f32 0.0, %v1210
      %v1212 = vpop.f32.mrb[0].mxu0
      %1213 = vmatprep.mubr.f32.mxu0 0.0
      %1214 = vmatmul.mubr.f32.gmra.mrb[0].mxu0 %v746
      %v1215 = vpop.f32.mrb[0].mxu0
      %v1216 = vadd.f32 0.0, %v1215
      %v1217 = vpop.f32.mrb[0].mxu0
      %1218 = vmatprep.mubr.f32.mxu0 0.0
      %1219 = vmatmul.mubr.f32.gmra.mrb[0].mxu0 %v748
      %v1220 = vpop.f32.mrb[0].mxu0
      %v1221 = vadd.f32 0.0, %v1220
      %v1222 = vpop.f32.mrb[0].mxu0
      %1223 = vmatprep.mubr.f32.mxu0 0.0
      %1224 = vmatmul.mubr.f32.gmra.mrb[0].mxu0 %v750
      %v1225 = vpop.f32.mrb[0].mxu0
      %v1226 = vadd.f32 0.0, %v1225
      %v1227 = vpop.f32.mrb[0].mxu0
      %1228 = vmatprep.mubr.f32.mxu0 0.0
      %1229 = vmatmul.mubr.f32.gmra.mrb[0].mxu0 %v1127
      %v1230 = vpop.f32.mrb[0].mxu0
      %v1231 = vadd.f32 0.0, %v1230
      %v1232 = vpop.f32.mrb[0].mxu0
      %1233 = vmatprep.mubr.f32.mxu0 0.0
      %1234 = vmatmul.mubr.f32.gmra.mrb[0].mxu0 %v1129
      %v1235 = vpop.f32.mrb[0].mxu0
      %v1236 = vadd.f32 0.0, %v1235
      %v1237 = vpop.f32.mrb[0].mxu0
      %1238 = vdwg.mxu0
      %v1239 = vadd.f32 %v1112, %v1201
      %v1240 = vadd.f32 %v1113, %v1206
      %v1241 = vadd.f32 %v1114, %v1211
      %v1242 = vadd.f32 %v1115, %v1216
      %v1243 = vadd.f32 %v1116, %v1221
      %v1244 = vadd.f32 %v1117, %v1226
      %v1245 = vadd.f32 %v1118, %v1231
      %v1246 = vadd.f32 %v1119, %v1236
      %s1247 = scalar_lea.vmem %s3, 24
      %v1248 = vld [vmem:[%s1247] sm:$0xf]
      %v1250 = vsel %vm463, %v424, 0
      %v1253 = vsel %vm463, %v425, 0
      %v1256 = vsel %vm480, %v1248, 0
      %1258 = vmatprep.subr.mxu0 0.0
      %1259 = vmatpush1.msra.mxu0 %v1256
      %1260 = vmatprep.subr.mxu0 0.0
      %1261 = vmatpush1.msra.mxu0 0.0
      %1262 = vmatprep.subr.mxu0 0.0
      %1263 = vmatpush1.msra.mxu0 0.0
      %1264 = vmatprep.subr.mxu0 0.0
      %1265 = vmatpush1.msra.mxu0 0.0
      %1266 = vmatprep.subr.mxu0 0.0
      %1267 = vmatpush1.msra.mxu0 0.0
      %1268 = vmatprep.subr.mxu0 0.0
      %1269 = vmatpush1.msra.mxu0 0.0
      %1270 = vmatprep.subr.mxu0 0.0
      %1271 = vmatpush1.msra.mxu0 0.0
      %1272 = vmatprep.subr.mxu0 0.0
      %1273 = vmatpush1.msra.mxu0 0.0
      %1274 = vmatprep.subr.mxu0 0.0
      %1275 = vmatpush1.msra.mxu0 0.0
      %1276 = vmatprep.subr.mxu0 0.0
      %1277 = vmatpush1.msra.mxu0 0.0
      %1278 = vmatprep.subr.mxu0 0.0
      %1279 = vmatpush1.msra.mxu0 0.0
      %1280 = vmatprep.subr.mxu0 0.0
      %1281 = vmatpush1.msra.mxu0 0.0
      %1282 = vmatprep.subr.mxu0 0.0
      %1283 = vmatpush1.msra.mxu0 0.0
      %1284 = vmatprep.subr.mxu0 0.0
      %1285 = vmatpush1.msra.mxu0 0.0
      %1286 = vmatprep.subr.mxu0 0.0
      %1287 = vmatpush1.msra.mxu0 0.0
      %1288 = vmatprep.subr.mxu0 0.0
      %1289 = vmatpush1.msra.mxu0 0.0
      %1290 = vmatprep.subr.mxu0 0.0
      %1291 = vmatpush1.msra.mxu0 0.0
      %1292 = vmatprep.subr.mxu0 0.0
      %1293 = vmatpush1.msra.mxu0 0.0
      %1294 = vmatprep.subr.mxu0 0.0
      %1295 = vmatpush1.msra.mxu0 0.0
      %1296 = vmatprep.subr.mxu0 0.0
      %1297 = vmatpush1.msra.mxu0 0.0
      %1298 = vmatprep.subr.mxu0 0.0
      %1299 = vmatpush1.msra.mxu0 0.0
      %1300 = vmatprep.subr.mxu0 0.0
      %1301 = vmatpush1.msra.mxu0 0.0
      %1302 = vmatprep.subr.mxu0 0.0
      %1303 = vmatpush1.msra.mxu0 0.0
      %1304 = vmatprep.subr.mxu0 0.0
      %1305 = vmatpush1.msra.mxu0 0.0
      %1306 = vmatprep.subr.mxu0 0.0
      %1307 = vmatpush1.msra.mxu0 0.0
      %1308 = vmatprep.subr.mxu0 0.0
      %1309 = vmatpush1.msra.mxu0 0.0
      %1310 = vmatprep.subr.mxu0 0.0
      %1311 = vmatpush1.msra.mxu0 0.0
      %1312 = vmatprep.subr.mxu0 0.0
      %1313 = vmatpush1.msra.mxu0 0.0
      %1314 = vmatprep.subr.mxu0 0.0
      %1315 = vmatpush1.msra.mxu0 0.0
      %1316 = vmatprep.subr.mxu0 0.0
      %1317 = vmatpush1.msra.mxu0 0.0
      %1318 = vmatprep.subr.mxu0 0.0
      %1319 = vmatpush1.msra.mxu0 0.0
      %1320 = vmatprep.subr.mxu0 0.0
      %1321 = vmatpush1.msra.mxu0 0.0
      %1322 = vmatprep.mubr.f32.mxu0 0.0
      %1323 = vmatmul.mubr.f32.gmra.mrb[0].mxu0 %v597
      %v1324 = vpop.f32.mrb[0].mxu0
      %v1325 = vadd.f32 0.0, %v1324
      %v1326 = vpop.f32.mrb[0].mxu0
      %1327 = vmatprep.mubr.f32.mxu0 0.0
      %1328 = vmatmul.mubr.f32.gmra.mrb[0].mxu0 %v599
      %v1329 = vpop.f32.mrb[0].mxu0
      %v1330 = vadd.f32 0.0, %v1329
      %v1331 = vpop.f32.mrb[0].mxu0
      %1332 = vmatprep.mubr.f32.mxu0 0.0
      %1333 = vmatmul.mubr.f32.gmra.mrb[0].mxu0 %v601
      %v1334 = vpop.f32.mrb[0].mxu0
      %v1335 = vadd.f32 0.0, %v1334
      %v1336 = vpop.f32.mrb[0].mxu0
      %1337 = vmatprep.mubr.f32.mxu0 0.0
      %1338 = vmatmul.mubr.f32.gmra.mrb[0].mxu0 %v603
      %v1339 = vpop.f32.mrb[0].mxu0
      %v1340 = vadd.f32 0.0, %v1339
      %v1341 = vpop.f32.mrb[0].mxu0
      %1342 = vmatprep.mubr.f32.mxu0 0.0
      %1343 = vmatmul.mubr.f32.gmra.mrb[0].mxu0 %v871
      %v1344 = vpop.f32.mrb[0].mxu0
      %v1345 = vadd.f32 0.0, %v1344
      %v1346 = vpop.f32.mrb[0].mxu0
      %1347 = vmatprep.mubr.f32.mxu0 0.0
      %1348 = vmatmul.mubr.f32.gmra.mrb[0].mxu0 %v874
      %v1349 = vpop.f32.mrb[0].mxu0
      %v1350 = vadd.f32 0.0, %v1349
      %v1351 = vpop.f32.mrb[0].mxu0
      %1352 = vmatprep.mubr.f32.mxu0 0.0
      %1353 = vmatmul.mubr.f32.gmra.mrb[0].mxu0 %v1250
      %v1354 = vpop.f32.mrb[0].mxu0
      %v1355 = vadd.f32 0.0, %v1354
      %v1356 = vpop.f32.mrb[0].mxu0
      %1357 = vmatprep.mubr.f32.mxu0 0.0
      %1358 = vmatmul.mubr.f32.gmra.mrb[0].mxu0 %v1253
      %v1359 = vpop.f32.mrb[0].mxu0
      %v1360 = vadd.f32 0.0, %v1359
      %v1361 = vpop.f32.mrb[0].mxu0
      %1362 = vdwg.mxu0
      %v1363 = vadd.f32 %v1239, %v1325
      %v1364 = vadd.f32 %v1240, %v1330
      %v1365 = vadd.f32 %v1241, %v1335
      %v1366 = vadd.f32 %v1242, %v1340
      %v1367 = vadd.f32 %v1243, %v1345
      %v1368 = vadd.f32 %v1244, %v1350
      %v1369 = vadd.f32 %v1245, %v1355
      %v1370 = vadd.f32 %v1246, %v1360
      %v1372 = vrot.slane %v424, 1
      %v1373 = vrot.slane %v425, 1
      %v1374 = vsel %vm440, %v1372, %v1373
      %v1375 = vrot.slane %v426, 1
      %v1376 = vsel %vm440, %v1373, %v1375
      %s1377 = scalar_lea.vmem %s3, 28
      %v1378 = vld [vmem:[%s1377] sm:$0xf]
      %v1379 = vsel %vm463, %v1374, 0
      %v1381 = vsel %vm463, %v1376, 0
      %v1384 = vsel %vm480, %v1378, 0
      %1386 = vmatprep.subr.mxu0 0.0
      %1387 = vmatpush1.msra.mxu0 %v1384
      %1388 = vmatprep.subr.mxu0 0.0
      %1389 = vmatpush1.msra.mxu0 0.0
      %1390 = vmatprep.subr.mxu0 0.0
      %1391 = vmatpush1.msra.mxu0 0.0
      %1392 = vmatprep.subr.mxu0 0.0
      %1393 = vmatpush1.msra.mxu0 0.0
      %1394 = vmatprep.subr.mxu0 0.0
      %1395 = vmatpush1.msra.mxu0 0.0
      %1396 = vmatprep.subr.mxu0 0.0
      %1397 = vmatpush1.msra.mxu0 0.0
      %1398 = vmatprep.subr.mxu0 0.0
      %1399 = vmatpush1.msra.mxu0 0.0
      %1400 = vmatprep.subr.mxu0 0.0
      %1401 = vmatpush1.msra.mxu0 0.0
      %1402 = vmatprep.subr.mxu0 0.0
      %1403 = vmatpush1.msra.mxu0 0.0
      %1404 = vmatprep.subr.mxu0 0.0
      %1405 = vmatpush1.msra.mxu0 0.0
      %1406 = vmatprep.subr.mxu0 0.0
      %1407 = vmatpush1.msra.mxu0 0.0
      %1408 = vmatprep.subr.mxu0 0.0
      %1409 = vmatpush1.msra.mxu0 0.0
      %1410 = vmatprep.subr.mxu0 0.0
      %1411 = vmatpush1.msra.mxu0 0.0
      %1412 = vmatprep.subr.mxu0 0.0
      %1413 = vmatpush1.msra.mxu0 0.0
      %1414 = vmatprep.subr.mxu0 0.0
      %1415 = vmatpush1.msra.mxu0 0.0
      %1416 = vmatprep.subr.mxu0 0.0
      %1417 = vmatpush1.msra.mxu0 0.0
      %1418 = vmatprep.subr.mxu0 0.0
      %1419 = vmatpush1.msra.mxu0 0.0
      %1420 = vmatprep.subr.mxu0 0.0
      %1421 = vmatpush1.msra.mxu0 0.0
      %1422 = vmatprep.subr.mxu0 0.0
      %1423 = vmatpush1.msra.mxu0 0.0
      %1424 = vmatprep.subr.mxu0 0.0
      %1425 = vmatpush1.msra.mxu0 0.0
      %1426 = vmatprep.subr.mxu0 0.0
      %1427 = vmatpush1.msra.mxu0 0.0
      %1428 = vmatprep.subr.mxu0 0.0
      %1429 = vmatpush1.msra.mxu0 0.0
      %1430 = vmatprep.subr.mxu0 0.0
      %1431 = vmatpush1.msra.mxu0 0.0
      %1432 = vmatprep.subr.mxu0 0.0
      %1433 = vmatpush1.msra.mxu0 0.0
      %1434 = vmatprep.subr.mxu0 0.0
      %1435 = vmatpush1.msra.mxu0 0.0
      %1436 = vmatprep.subr.mxu0 0.0
      %1437 = vmatpush1.msra.mxu0 0.0
      %1438 = vmatprep.subr.mxu0 0.0
      %1439 = vmatpush1.msra.mxu0 0.0
      %1440 = vmatprep.subr.mxu0 0.0
      %1441 = vmatpush1.msra.mxu0 0.0
      %1442 = vmatprep.subr.mxu0 0.0
      %1443 = vmatpush1.msra.mxu0 0.0
      %1444 = vmatprep.subr.mxu0 0.0
      %1445 = vmatpush1.msra.mxu0 0.0
      %1446 = vmatprep.subr.mxu0 0.0
      %1447 = vmatpush1.msra.mxu0 0.0
      %1448 = vmatprep.subr.mxu0 0.0
      %1449 = vmatpush1.msra.mxu0 0.0
      %1450 = vmatprep.mubr.f32.mxu0 0.0
      %1451 = vmatmul.mubr.f32.gmra.mrb[0].mxu0 %v472
      %v1452 = vpop.f32.mrb[0].mxu0
      %v1453 = vadd.f32 0.0, %v1452
      %v1454 = vpop.f32.mrb[0].mxu0
      %1455 = vmatprep.mubr.f32.mxu0 0.0
      %1456 = vmatmul.mubr.f32.gmra.mrb[0].mxu0 %v474
      %v1457 = vpop.f32.mrb[0].mxu0
      %v1458 = vadd.f32 0.0, %v1457
      %v1459 = vpop.f32.mrb[0].mxu0
      %1460 = vmatprep.mubr.f32.mxu0 0.0
      %1461 = vmatmul.mubr.f32.gmra.mrb[0].mxu0 %v476
      %v1462 = vpop.f32.mrb[0].mxu0
      %v1463 = vadd.f32 0.0, %v1462
      %v1464 = vpop.f32.mrb[0].mxu0
      %1465 = vmatprep.mubr.f32.mxu0 0.0
      %1466 = vmatmul.mubr.f32.gmra.mrb[0].mxu0 %v478
      %v1467 = vpop.f32.mrb[0].mxu0
      %v1468 = vadd.f32 0.0, %v1467
      %v1469 = vpop.f32.mrb[0].mxu0
      %1470 = vmatprep.mubr.f32.mxu0 0.0
      %1471 = vmatmul.mubr.f32.gmra.mrb[0].mxu0 %v1000
      %v1472 = vpop.f32.mrb[0].mxu0
      %v1473 = vadd.f32 0.0, %v1472
      %v1474 = vpop.f32.mrb[0].mxu0
      %1475 = vmatprep.mubr.f32.mxu0 0.0
      %1476 = vmatmul.mubr.f32.gmra.mrb[0].mxu0 %v1002
      %v1477 = vpop.f32.mrb[0].mxu0
      %v1478 = vadd.f32 0.0, %v1477
      %v1479 = vpop.f32.mrb[0].mxu0
      %1480 = vmatprep.mubr.f32.mxu0 0.0
      %1481 = vmatmul.mubr.f32.gmra.mrb[0].mxu0 %v1379
      %v1482 = vpop.f32.mrb[0].mxu0
      %v1483 = vadd.f32 0.0, %v1482
      %v1484 = vpop.f32.mrb[0].mxu0
      %1485 = vmatprep.mubr.f32.mxu0 0.0
      %1486 = vmatmul.mubr.f32.gmra.mrb[0].mxu0 %v1381
      %v1487 = vpop.f32.mrb[0].mxu0
      %v1488 = vadd.f32 0.0, %v1487
      %v1489 = vpop.f32.mrb[0].mxu0
      %1490 = vdwg.mxu0
      %v1491 = vadd.f32 %v1363, %v1453
      %v1492 = vadd.f32 %v1364, %v1458
      %v1493 = vadd.f32 %v1365, %v1463
      %v1494 = vadd.f32 %v1366, %v1468
      %v1495 = vadd.f32 %v1367, %v1473
      %v1496 = vadd.f32 %v1368, %v1478
      %v1497 = vadd.f32 %v1369, %v1483
      %v1498 = vadd.f32 %v1370, %v1488
      %v1499 = vrot.slane %v424, 2
      %v1500 = vrot.slane %v425, 2
      %v1501 = vsel %vm713, %v1499, %v1500
      %v1502 = vrot.slane %v426, 2
      %v1503 = vsel %vm713, %v1500, %v1502
      %s1504 = scalar_lea.vmem %s3, 32
      %v1505 = vld [vmem:[%s1504] sm:$0xf]
      %v1506 = vsel %vm463, %v1501, 0
      %v1508 = vsel %vm463, %v1503, 0
      %v1511 = vsel %vm480, %v1505, 0
      %1513 = vmatprep.subr.mxu0 0.0
      %1514 = vmatpush1.msra.mxu0 %v1511
      %1515 = vmatprep.subr.mxu0 0.0
      %1516 = vmatpush1.msra.mxu0 0.0
      %1517 = vmatprep.subr.mxu0 0.0
      %1518 = vmatpush1.msra.mxu0 0.0
      %1519 = vmatprep.subr.mxu0 0.0
      %1520 = vmatpush1.msra.mxu0 0.0
      %1521 = vmatprep.subr.mxu0 0.0
      %1522 = vmatpush1.msra.mxu0 0.0
      %1523 = vmatprep.subr.mxu0 0.0
      %1524 = vmatpush1.msra.mxu0 0.0
      %1525 = vmatprep.subr.mxu0 0.0
      %1526 = vmatpush1.msra.mxu0 0.0
      %1527 = vmatprep.subr.mxu0 0.0
      %1528 = vmatpush1.msra.mxu0 0.0
      %1529 = vmatprep.subr.mxu0 0.0
      %1530 = vmatpush1.msra.mxu0 0.0
      %1531 = vmatprep.subr.mxu0 0.0
      %1532 = vmatpush1.msra.mxu0 0.0
      %1533 = vmatprep.subr.mxu0 0.0
      %1534 = vmatpush1.msra.mxu0 0.0
      %1535 = vmatprep.subr.mxu0 0.0
      %1536 = vmatpush1.msra.mxu0 0.0
      %1537 = vmatprep.subr.mxu0 0.0
      %1538 = vmatpush1.msra.mxu0 0.0
      %1539 = vmatprep.subr.mxu0 0.0
      %1540 = vmatpush1.msra.mxu0 0.0
      %1541 = vmatprep.subr.mxu0 0.0
      %1542 = vmatpush1.msra.mxu0 0.0
      %1543 = vmatprep.subr.mxu0 0.0
      %1544 = vmatpush1.msra.mxu0 0.0
      %1545 = vmatprep.subr.mxu0 0.0
      %1546 = vmatpush1.msra.mxu0 0.0
      %1547 = vmatprep.subr.mxu0 0.0
      %1548 = vmatpush1.msra.mxu0 0.0
      %1549 = vmatprep.subr.mxu0 0.0
      %1550 = vmatpush1.msra.mxu0 0.0
      %1551 = vmatprep.subr.mxu0 0.0
      %1552 = vmatpush1.msra.mxu0 0.0
      %1553 = vmatprep.subr.mxu0 0.0
      %1554 = vmatpush1.msra.mxu0 0.0
      %1555 = vmatprep.subr.mxu0 0.0
      %1556 = vmatpush1.msra.mxu0 0.0
      %1557 = vmatprep.subr.mxu0 0.0
      %1558 = vmatpush1.msra.mxu0 0.0
      %1559 = vmatprep.subr.mxu0 0.0
      %1560 = vmatpush1.msra.mxu0 0.0
      %1561 = vmatprep.subr.mxu0 0.0
      %1562 = vmatpush1.msra.mxu0 0.0
      %1563 = vmatprep.subr.mxu0 0.0
      %1564 = vmatpush1.msra.mxu0 0.0
      %1565 = vmatprep.subr.mxu0 0.0
      %1566 = vmatpush1.msra.mxu0 0.0
      %1567 = vmatprep.subr.mxu0 0.0
      %1568 = vmatpush1.msra.mxu0 0.0
      %1569 = vmatprep.subr.mxu0 0.0
      %1570 = vmatpush1.msra.mxu0 0.0
      %1571 = vmatprep.subr.mxu0 0.0
      %1572 = vmatpush1.msra.mxu0 0.0
      %1573 = vmatprep.subr.mxu0 0.0
      %1574 = vmatpush1.msra.mxu0 0.0
      %1575 = vmatprep.subr.mxu0 0.0
      %1576 = vmatpush1.msra.mxu0 0.0
      %1577 = vmatprep.mubr.f32.mxu0 0.0
      %1578 = vmatmul.mubr.f32.gmra.mrb[0].mxu0 %v744
      %v1579 = vpop.f32.mrb[0].mxu0
      %v1580 = vadd.f32 0.0, %v1579
      %v1581 = vpop.f32.mrb[0].mxu0
      %1582 = vmatprep.mubr.f32.mxu0 0.0
      %1583 = vmatmul.mubr.f32.gmra.mrb[0].mxu0 %v746
      %v1584 = vpop.f32.mrb[0].mxu0
      %v1585 = vadd.f32 0.0, %v1584
      %v1586 = vpop.f32.mrb[0].mxu0
      %1587 = vmatprep.mubr.f32.mxu0 0.0
      %1588 = vmatmul.mubr.f32.gmra.mrb[0].mxu0 %v748
      %v1589 = vpop.f32.mrb[0].mxu0
      %v1590 = vadd.f32 0.0, %v1589
      %v1591 = vpop.f32.mrb[0].mxu0
      %1592 = vmatprep.mubr.f32.mxu0 0.0
      %1593 = vmatmul.mubr.f32.gmra.mrb[0].mxu0 %v750
      %v1594 = vpop.f32.mrb[0].mxu0
      %v1595 = vadd.f32 0.0, %v1594
      %v1596 = vpop.f32.mrb[0].mxu0
      %1597 = vmatprep.mubr.f32.mxu0 0.0
      %1598 = vmatmul.mubr.f32.gmra.mrb[0].mxu0 %v1127
      %v1599 = vpop.f32.mrb[0].mxu0
      %v1600 = vadd.f32 0.0, %v1599
      %v1601 = vpop.f32.mrb[0].mxu0
      %1602 = vmatprep.mubr.f32.mxu0 0.0
      %1603 = vmatmul.mubr.f32.gmra.mrb[0].mxu0 %v1129
      %v1604 = vpop.f32.mrb[0].mxu0
      %v1605 = vadd.f32 0.0, %v1604
      %v1606 = vpop.f32.mrb[0].mxu0
      %1607 = vmatprep.mubr.f32.mxu0 0.0
      %1608 = vmatmul.mubr.f32.gmra.mrb[0].mxu0 %v1506
      %v1609 = vpop.f32.mrb[0].mxu0
      %v1610 = vadd.f32 0.0, %v1609
      %v1611 = vpop.f32.mrb[0].mxu0
      %1612 = vmatprep.mubr.f32.mxu0 0.0
      %1613 = vmatmul.mubr.f32.gmra.mrb[0].mxu0 %v1508
      %v1614 = vpop.f32.mrb[0].mxu0
      %v1615 = vadd.f32 0.0, %v1614
      %v1616 = vpop.f32.mrb[0].mxu0
      %1617 = vdwg.mxu0
      %v1618 = vadd.f32 %v1491, %v1580
      %v1619 = vadd.f32 %v1492, %v1585
      %v1620 = vadd.f32 %v1493, %v1590
      %v1621 = vadd.f32 %v1494, %v1595
      %v1622 = vadd.f32 %v1495, %v1600
      %v1623 = vadd.f32 %v1496, %v1605
      %v1624 = vadd.f32 %v1497, %v1610
      %v1625 = vadd.f32 %v1498, %v1615
      %1626 = vst [vmem:[%s397] sm:$0xff] %v1618
      %1627 = vst [vmem:[%s397 + $0x8] sm:$0xff] %v1619
      %1628 = vst [vmem:[%s397 + $0x10] sm:$0xff] %v1620
      %1629 = vst [vmem:[%s397 + $0x18] sm:$0xff] %v1621
      %1630 = vst [vmem:[%s397 + $0x20] sm:$0xff] %v1622
      %1631 = vst [vmem:[%s397 + $0x28] sm:$0xff] %v1623
      %1632 = vst [vmem:[%s397 + $0x30] sm:$0xff] %v1624
      %1633 = vst [vmem:[%s397 + $0x38] sm:$0xff] %v1625
      %v1634 = vadd.f32 %v1618, %v1619
      %v1635 = vadd.f32 %v1634, %v1620
      %v1636 = vadd.f32 %v1635, %v1621
      %v1637 = vadd.f32 %v1636, %v1622
      %v1638 = vadd.f32 %v1637, %v1623
      %v1639 = vadd.f32 %v1638, %v1624
      %v1640 = vadd.f32 %v1639, %v1625
      %v1641 = vrot.slane %v1640, 4
      %v1642 = vadd.f32 %v1640, %v1641
      %v1643 = vrot.slane %v1642, 2
      %v1644 = vadd.f32 %v1642, %v1643
      %v1645 = vrot.slane %v1644, 1
      %v1646 = vadd.f32 %v1644, %v1645
      %v1647 = vmul.f32 %v1618, %v1618
      %v1648 = vmul.f32 %v1619, %v1619
      %v1649 = vmul.f32 %v1620, %v1620
      %v1650 = vmul.f32 %v1621, %v1621
      %v1651 = vmul.f32 %v1622, %v1622
      %v1652 = vmul.f32 %v1623, %v1623
      %v1653 = vmul.f32 %v1624, %v1624
      %v1654 = vmul.f32 %v1625, %v1625
      %v1655 = vadd.f32 %v1647, %v1648
      %v1656 = vadd.f32 %v1655, %v1649
      %v1657 = vadd.f32 %v1656, %v1650
      %v1658 = vadd.f32 %v1657, %v1651
      %v1659 = vadd.f32 %v1658, %v1652
      %v1660 = vadd.f32 %v1659, %v1653
      %v1661 = vadd.f32 %v1660, %v1654
      %v1662 = vrot.slane %v1661, 4
      %v1663 = vadd.f32 %v1661, %v1662
      %v1664 = vrot.slane %v1663, 2
      %v1665 = vadd.f32 %v1663, %v1664
      %v1666 = vrot.slane %v1665, 1
      %v1667 = vadd.f32 %v1665, %v1666
      %vm1668 = vcmask 1040384
      %v1669 = vsel %vm1668, %v1646, %v1667
      %vm1670 = vcmask 1041408
      %v1671 = vsel %vm1670, %v1669, 0.0
      %1672 = vst [vmem:[%s406] sm:$0xff] %v1671
      %s1673 = smul.u32 %s21, 4
      %s1674 = sadd.s32 %s1673, %s22
      %s1675 = smul.u32 8, %s1674
      %p1676 = scmp.lt.s32.totalorder %s1675, 63
      %s1677 = scalar_select %p1676, %s1675, 63
      %s1678 = smul.addr %s1677, 8
      %s1679 = scalar_lea.vmem %s4, %s1678
      %s1680 = smul.u32 %s21, 4
      %s1681 = sadd.s32 %s1680, %s22
      %p1682 = scmp.lt.s32.totalorder %s1681, 7
      %s1683 = scalar_select %p1682, %s1681, 7
      %s1684 = smul.addr %s1683, 8
      %s1685 = scalar_lea.vmem %s5, %s1684
      // Predicated region
      $region37: #{conv_bn2d.2} parent=35 // pred_check
        %p1686 = pneg %p164
      $region38: #{conv_bn2d.2} parent=35 // pred_check_branch
        %1688 = sbr.rel (%p1686) target = $region40
      $region39: #{conv_bn2d.2} parent=35 // pred_region
        %s1689 = smul.u32 %s21, 4
        %s1690 = sadd.s32 %s1689, %s22
        %s1691 = smul.u32 8, %s1690
      $region40: #{conv_bn2d.2} parent=35 // pred_fallthru
        _
      // Predicated region
      $region41: #{conv_bn2d.2} parent=35 // pred_check
        %p1692 = pneg %p194
      $region42: #{conv_bn2d.2} parent=35 // pred_check_branch
        %1694 = sbr.rel (%p1692) target = $region44
      $region43: #{conv_bn2d.2} parent=35 // pred_region
        %s1695 = smul.u32 %s21, 4
        %s1696 = sadd.s32 %s1695, %s22
      $region44: #{conv_bn2d.2} parent=35 // pred_fallthru
        _
    $region36: #{conv_bn2d.2} parent=5 // pred_fallthru
      _
    %p1697 = scmp.le.s32.totalorder 2, %s12
    // Predicated region
    $region45: #{conv_bn2d.2} parent=5 // pred_check
      %p1698 = pneg %p1697
    $region46: #{conv_bn2d.2} parent=5 // pred_check_branch
      %1700 = sbr.rel (%p1698) target = $region48
    $region47: #{conv_bn2d.2} parent=5 // pred_region
      %s1701 = ssub.s32 %s12, 2
      // Predicated region
      $region49: #{conv_bn2d.2} parent=47 // pred_check
        %p1702 = pneg %p170
      $region50: #{conv_bn2d.2} parent=47 // pred_check_branch
        %1704 = sbr.rel (%p1702) target = $region52
      $region51: #{conv_bn2d.2} parent=47 // pred_region
        %s1705 = smul.u32 %s23, 4
        %s1706 = sadd.s32 %s1705, %s24
        %s1707 = smul.u32 8, %s1706
        %p1708 = scmp.lt.s32.totalorder %s1707, 63
        %s1709 = scalar_select %p1708, %s1707, 63
        %s1710 = smul.addr %s1709, 8
        %s1711 = scalar_lea.vmem %s4, %s1710
      $region52: #{conv_bn2d.2} parent=47 // pred_fallthru
        _
      // Predicated region
      $region53: #{conv_bn2d.2} parent=47 // pred_check
        %p1712 = pneg %p200
      $region54: #{conv_bn2d.2} parent=47 // pred_check_branch
        %1714 = sbr.rel (%p1712) target = $region56
      $region55: #{conv_bn2d.2} parent=47 // pred_region
        %s1715 = smul.u32 %s23, 4
        %s1716 = sadd.s32 %s1715, %s24
        %p1717 = scmp.lt.s32.totalorder %s1716, 7
        %s1718 = scalar_select %p1717, %s1716, 7
        %s1719 = smul.addr %s1718, 8
        %s1720 = scalar_lea.vmem %s5, %s1719
      $region56: #{conv_bn2d.2} parent=47 // pred_fallthru
        _
    $region48: #{conv_bn2d.2} parent=5 // pred_fallthru
      _
  $region6: #{conv_bn2d.2} parent=0 // loop_footer
    %s16 = sadd.s32 1, %s12
  $region7: #{conv_bn2d.2} parent=0 // loop_footer_branch
    %11 = sbr.rel target = $region3
  $region8: #{conv_bn2d.2} parent=0 // loop_exit
    _

</llo_original>
